<compile_context>
chip_gen: v6e
topology: v6e:2x2x1
jax: 0.10.0
libtpu: 0.0.40
codegen_flags: <defaults>
</compile_context>

<pallas_src>
import jax
import jax.numpy as jnp
import numpy as np
from jax.experimental import pallas as pl
from jax.experimental.pallas import tpu as pltpu


# ----------------------------- JAX glue ops ------------------------------- #

def square_distance(a, b):
    # a: (B, S, 3), b: (B, N, 3) -> (B, S, N)
    return jnp.sum((a[:, :, None, :] - b[:, None, :, :]) ** 2, axis=-1)


def index_points(points, idx):
    # points: (B, N, C), idx: (B, ...) -> (B, ..., C)
    return jax.vmap(lambda p, i: p[i])(points, idx)


def gather_channel_major(src_cm, idx_flat):
    # src_cm: (B, C, N), idx_flat: (B, L) -> (B, C, L)
    return jax.vmap(lambda s, i: s[:, i])(src_cm, idx_flat)


def farthest_point_sample(xyz, npoint):
    # Deterministic FPS (seed index 0 instead of torch.randint, reproducible).
    B, N, _ = xyz.shape

    def body(i, state):
        centroids, distance, farthest = state
        centroids = centroids.at[:, i].set(farthest)
        centroid = index_points(xyz, farthest[:, None])          # (B, 1, 3)
        dist = jnp.sum((xyz - centroid) ** 2, axis=-1)
        distance = jnp.minimum(distance, dist)
        farthest = jnp.argmax(distance, axis=-1).astype(jnp.int32)
        return centroids, distance, farthest

    centroids = jnp.zeros((B, npoint), dtype=jnp.int32)
    distance = jnp.full((B, N), 1e10, dtype=xyz.dtype)
    farthest = jnp.zeros((B,), dtype=jnp.int32)
    centroids, _, _ = jax.lax.fori_loop(0, npoint, body,
                                        (centroids, distance, farthest))
    return centroids


def ball_query(radius, nsample, xyz, new_xyz):
    B, N, _ = xyz.shape
    sqrdists = square_distance(new_xyz, xyz)                      # (B, P, N)
    group_idx = jnp.broadcast_to(jnp.arange(N, dtype=jnp.int32),
                                 sqrdists.shape)
    group_idx = jnp.where(sqrdists > radius ** 2, N, group_idx)
    group_idx = jnp.sort(group_idx, axis=-1)[:, :, :nsample]
    group_first = jnp.broadcast_to(group_idx[:, :, :1], group_idx.shape)
    group_idx = jnp.where(group_idx == N, group_first, group_idx)
    return group_idx                                              # (B, P, S)


def query_and_group_lanes(radius, nsample, xyz, new_xyz, features,
                          tile_p, p_pad, cin_pad):
    """Gather grouped features directly into the kernel's lane-dense layout
    (B, cin_pad, n_tiles, nsample*tile_p) bf16.

    Channel layout: [xyz offsets (3), features (C), ones (1, layer-0 bias fold),
    zero padding up to cin_pad].  Points are padded (with idx 0) to p_pad; the
    padded outputs are sliced off by the caller.
    """
    B, _, _ = xyz.shape
    P = new_xyz.shape[1]
    S = nsample
    idx = ball_query(radius, nsample, xyz, new_xyz)               # (B, P, S)
    new_xyz_p = new_xyz
    if p_pad > P:
        idx = jnp.pad(idx, ((0, 0), (0, p_pad - P), (0, 0)))
        new_xyz_p = jnp.pad(new_xyz, ((0, 0), (0, p_pad - P), (0, 0)))
    T = p_pad // tile_p

    # Reorder gather indices so the flattened lane axis is (tile, sample, point):
    # (B, P, S) -> (B, T, tile_p, S) -> (B, T, S, tile_p) -> (B, T*S*tile_p)
    idx_r = idx.reshape(B, T, tile_p, S).transpose(0, 1, 3, 2).reshape(B, -1)

    # Gather from channel-major sources straight into the kernel layout
    # (avoids a materialized HBM transpose of the big grouped tensor).
    xyz_cm = jnp.swapaxes(xyz, 1, 2)                              # (B, 3, N)
    g_xyz = gather_channel_major(xyz_cm, idx_r)                   # (B, 3, T*S*tp)
    g_xyz = g_xyz.reshape(B, 3, T, S, tile_p)
    ctr = jnp.swapaxes(new_xyz_p, 1, 2).reshape(B, 3, T, 1, tile_p)
    g_xyz = (g_xyz - ctr).reshape(B, 3, T, S * tile_p)

    parts = [g_xyz]
    if features is not None:
        feat_cm = jnp.swapaxes(features, 1, 2)                    # (B, C, N)
        g_feat = gather_channel_major(feat_cm, idx_r)
        parts.append(g_feat.reshape(B, features.shape[-1], T, S * tile_p))

    cin = sum(p.shape[1] for p in parts)
    pad_c = cin_pad - cin                                         # >= 1
    parts.append(jnp.ones((B, 1, T, S * tile_p), g_xyz.dtype))    # ones channel
    if pad_c > 1:
        parts.append(jnp.zeros((B, pad_c - 1, T, S * tile_p), g_xyz.dtype))
    return jnp.concatenate(parts, axis=1).astype(jnp.bfloat16)


# --------------------------- Pallas hot path ------------------------------ #

def _round_up(x, m):
    return ((x + m - 1) // m) * m


def _tpu_budgets():
    """(max_tile_p, vmem_limit_bytes). Conservative defaults are safe on v7x
    (64 MiB VMEM/TC); chips with 128 MiB VMEM (v5e/v6e) get bigger tiles."""
    max_tile_p, vmem_mib = 256, 48
    try:
        vmem = int(pltpu.get_tpu_info().vmem_capacity_bytes)
        if vmem >= 96 * 2**20:
            max_tile_p, vmem_mib = 512, 96
    except Exception:
        pass
    return max_tile_p, vmem_mib * 2**20


def _pick_tile_p(P, B, max_tile_p):
    """Pad npoint to a multiple of 128 and pick a lane-dense tile that divides
    it. Guarantees >= 2 grid steps so both v7x TensorCores get work."""
    p_pad = _round_up(P, 128)
    tile_p = min(max_tile_p, p_pad)
    while p_pad % tile_p:
        tile_p -= 128
    if B * (p_pad // tile_p) < 2 and tile_p % 256 == 0:
        tile_p //= 2
    return tile_p, p_pad


def _pick_chunk(nsample, max_chunk=8):
    """Largest divisor of nsample that is <= max_chunk (samples batched per
    matmul)."""
    for c in range(min(nsample, max_chunk), 0, -1):
        if nsample % c == 0:
            return c
    return 1


def _pack_mlp_params(weights, biases, cpad):
    """Pack per-layer (Cout_l, Cin_l) weights / (Cout_l,) biases into a single
    bf16 weight tensor and a single f32 bias tensor at padded channel sizes.
    Layer-0 bias is folded into the weight column of the all-ones channel."""
    L = len(weights)
    cmax = max(cpad)
    w_np = np.zeros((L, cmax, cmax), np.float32)
    b_np = np.zeros((L, cmax, 1), np.float32)
    cin0 = int(weights[0].shape[1])
    for l, (w, b) in enumerate(zip(weights, biases)):
        co, ci = int(w.shape[0]), int(w.shape[1])
        w_np[l, :co, :ci] = np.asarray(w, np.float32)
        if l == 0:
            w_np[l, :co, cin0] = np.asarray(b, np.float32)   # ones-channel fold
        else:
            b_np[l, :co, 0] = np.asarray(b, np.float32)
    return jnp.asarray(w_np, jnp.bfloat16), jnp.asarray(b_np, jnp.float32)


def _make_mlp_pool_kernel(cpad, nsample, tile_p, chunk):
    """cpad = [cin_pad(with ones), cout_pad_1, ..., cout_pad_L]."""
    L = len(cpad) - 1
    n_chunks = nsample // chunk
    lanes = chunk * tile_p

    def kernel(g_ref, w_ref, b_ref, out_ref):
        # g_ref:   (cin_pad, nsample*tile_p)  bf16, lanes ordered (sample, point)
        # w_ref:   (L, cmax, cmax)            bf16 packed folded Conv1x1+BN weights
        # b_ref:   (L, cmax, 1)               f32  biases (layer-0 row unused)
        # out_ref: (cout_pad_last, tile_p)    f32 pooled output (lane dim = points)
        w_all = w_ref[...]
        b_all = b_ref[...]
        ws = [w_all[l, :cpad[l + 1], :cpad[l]] for l in range(L)]
        # Hoisted bias broadcasts for layers >= 1 (layer 0 is folded; JAX does
        # not CSE broadcast_in_dim, so do it once, outside the chunk loop).
        bbs = [jnp.broadcast_to(b_all[l, :cpad[l + 1], :], (cpad[l + 1], lanes))
               for l in range(1, L)]

        # ReLU outputs are >= 0, so 0-init makes the running max equal to
        # max_pool2d over the sample axis; it also subsumes the last-layer ReLU.
        acc = jnp.zeros((cpad[-1], tile_p), jnp.float32)

        # TODO(synk): switch to lax.fori_loop(..., unroll=2) if n_chunks ever
        # exceeds ~8 (nsample > 64) to bound live ranges; static unroll is fine
        # for realistic nsample <= 64 with chunk=8.
        for c in range(n_chunks):
            x = g_ref[:, pl.ds(c * lanes, lanes)]        # (cin_pad, lanes) bf16
            # Layer 0: bias comes in through the ones channel -> pure matmul.
            y = jnp.dot(ws[0], x, preferred_element_type=jnp.float32)
            if L > 1:
                y = jnp.maximum(y, 0.0)
            for l in range(1, L):
                xb = y.astype(jnp.bfloat16)
                y = jnp.dot(ws[l], xb,
                            preferred_element_type=jnp.float32) + bbs[l - 1]
                if l + 1 < L:                            # last-layer ReLU dropped
                    y = jnp.maximum(y, 0.0)
            # Running max over this chunk's sample lane-slices (static, aligned).
            for s in range(chunk):
                acc = jnp.maximum(acc, y[:, s * tile_p:(s + 1) * tile_p])
        out_ref[...] = acc
        # TODO(synk): avg_pool pool_method variant not wired (module default is
        # max_pool).

    return kernel


def sa_grouper_mlp_pool(xyz, new_xyz, features, radius, nsample,
                        weights, biases):
    """One grouper + shared-MLP + max-pool. Returns (B, Cout_last, npoint) f32,
    already in the PyTorch (B, C, npoint) convention."""
    B = xyz.shape[0]
    P = new_xyz.shape[1]
    cin = 3 + (features.shape[-1] if features is not None else 0)
    assert int(weights[0].shape[1]) == cin, "first MLP layer must match Cin"
    c_outs = [int(w.shape[0]) for w in weights]
    # +1 for the ones channel (layer-0 bias fold); bf16 sublane packing -> 16.
    cpad = [_round_up(cin + 1, 16)] + [_round_up(c, 16) for c in c_outs]

    max_tile_p, vmem_limit = _tpu_budgets()
    tile_p, p_pad = _pick_tile_p(P, B, max_tile_p)
    n_tiles = p_pad // tile_p
    chunk = _pick_chunk(nsample)

    grouped = query_and_group_lanes(radius, nsample, xyz, new_xyz, features,
                                    tile_p, p_pad, cpad[0])
    w_all, b_all = _pack_mlp_params(weights, biases, cpad)
    kernel = _make_mlp_pool_kernel(cpad, nsample, tile_p, chunk)

    out = pl.pallas_call(
        kernel,
        out_shape=jax.ShapeDtypeStruct((B, cpad[-1], p_pad), jnp.float32),
        grid_spec=pltpu.PrefetchScalarGridSpec(
            num_scalar_prefetch=0,
            grid=(B, n_tiles),
            in_specs=[
                # grouped: tile over (batch, point-tile); samples*points on lanes.
                pl.BlockSpec((None, cpad[0], None, nsample * tile_p),
                             lambda b, t: (b, 0, t, 0)),
                # packed weights / biases: constant block, fetched once.
                pl.BlockSpec(w_all.shape, lambda b, t: (0, 0, 0)),
                pl.BlockSpec(b_all.shape, lambda b, t: (0, 0, 0)),
            ],
            out_specs=pl.BlockSpec((None, cpad[-1], tile_p),
                                   lambda b, t: (b, 0, t)),
        ),
        compiler_params=pltpu.CompilerParams(
            # Both axes independent -> megacore sharding on v7x; no-op elsewhere.
            dimension_semantics=("parallel", "parallel"),
            vmem_limit_bytes=vmem_limit,
        ),
    )(grouped, w_all, b_all)
    return out[:, :c_outs[-1], :P]


# ----------------------- module forward (wrapper) -------------------------- #

def pointnet_sa_forward(xyz, features, npoint, grouper_cfgs, params,
                        new_xyz=None):
    """Equivalent of _PointnetSAModuleBase.forward with pool_method='max_pool'.

    Returns (new_xyz (B, npoint, 3), new_features (B, sum_k Cout_k, npoint)).
    """
    if new_xyz is None:
        assert npoint is not None
        # TODO(synk): GroupAll (npoint=None / new_xyz=None) path not wired.
        new_xyz = index_points(xyz, farthest_point_sample(xyz, npoint))
    feats_list = []
    for cfg, (weights, biases) in zip(grouper_cfgs, params):
        feats_list.append(
            sa_grouper_mlp_pool(xyz, new_xyz, features,
                                cfg["radius"], cfg["nsample"], weights, biases))
    return new_xyz, jnp.concatenate(feats_list, axis=1)


def init_mlp_params(key, channel_list, eps=1e-5):
    """Conv2d(1x1, bias=False) + BatchNorm2d folded into (w (Cout,Cin), b (Cout,))."""
    weights, biases = [], []
    for cin, cout in zip(channel_list[:-1], channel_list[1:]):
        key, kw, kg, kb, km, kv = jax.random.split(key, 6)
        w = jax.random.normal(kw, (cout, cin), jnp.float32) * 0.1
        gamma = 1.0 + 0.05 * jax.random.normal(kg, (cout,), jnp.float32)
        beta = 0.05 * jax.random.normal(kb, (cout,), jnp.float32)
        mean = 0.05 * jax.random.normal(km, (cout,), jnp.float32)
        var = jnp.abs(1.0 + 0.05 * jax.random.normal(kv, (cout,), jnp.float32))
        scale = gamma / jnp.sqrt(var + eps)
        weights.append(w * scale[:, None])
        biases.append(beta - mean * scale)
    return key, (weights, biases)


# ------------------------- plain-JAX reference ----------------------------- #

def query_and_group_ref(radius, nsample, xyz, new_xyz, features):
    """Reference grouping in the simple (B, S, Cin, P) layout."""
    idx = ball_query(radius, nsample, xyz, new_xyz)                  # (B, P, S)
    grouped_xyz = index_points(xyz, idx) - new_xyz[:, :, None, :]    # (B, P, S, 3)
    if features is not None:
        grouped = jnp.concatenate([grouped_xyz, index_points(features, idx)],
                                  axis=-1)
    else:
        grouped = grouped_xyz
    return jnp.transpose(grouped, (0, 2, 3, 1))                      # (B, S, Cin, P)


def _reference_mlp_pool(grouped, weights, biases):
    """Plain-JAX reference using the same bf16-input / f32-accumulate math
    (layer-0 bias goes through bf16 like the folded weight column)."""
    x = grouped.astype(jnp.bfloat16)
    L = len(weights)
    for i, (w, b) in enumerate(zip(weights, biases)):
        b_eff = b.astype(jnp.bfloat16).astype(jnp.float32) if i == 0 else b
        y = jnp.einsum("oc,bscp->bsop", w.astype(jnp.bfloat16), x,
                       preferred_element_type=jnp.float32)
        y = jnp.maximum(y + b_eff[None, None, :, None], 0.0)
        x = y.astype(jnp.bfloat16) if i + 1 < L else y
    return jnp.max(x, axis=1)                                        # (B, Cout, P)


if __name__ == "__main__":
    key = jax.random.PRNGKey(0)
    B, N, C, npoint = 2, 64, 4, 16

    key, kx, kf = jax.random.split(key, 3)
    xyz = jax.random.uniform(kx, (B, N, 3), jnp.float32)
    features = jax.random.normal(kf, (B, N, C), jnp.float32)

    # Two groupers (multi-scale), each with its own shared MLP: [3+C, 16, 32]
    grouper_cfgs = [dict(radius=0.3, nsample=8), dict(radius=0.6, nsample=16)]
    params = []
    for _ in grouper_cfgs:
        key, p = init_mlp_params(key, [3 + C, 16, 32])
        params.append(p)

    new_xyz, new_features = pointnet_sa_forward(xyz, features, npoint,
                                                grouper_cfgs, params)
    jax.block_until_ready((new_xyz, new_features))

    assert new_xyz.shape == (B, npoint, 3)
    assert new_features.shape == (B, 64, npoint)   # sum_k mlps[k][-1] = 32+32

    # Correctness check of the Pallas hot path against a plain-JAX reference
    # performing the same bf16 math.
    ref_list = []
    for cfg, (weights, biases) in zip(grouper_cfgs, params):
        grouped_ref = query_and_group_ref(cfg["radius"], cfg["nsample"],
                                          xyz, new_xyz, features)
        ref_list.append(_reference_mlp_pool(grouped_ref, weights, biases))
    ref_features = jnp.concatenate(ref_list, axis=1)
    np.testing.assert_allclose(np.asarray(new_features),
                               np.asarray(ref_features), rtol=1e-2, atol=1e-2)

    print("KERNEL_OK")
</pallas_src>

<mosaic_0001>
module attributes {stable_mosaic.version = 11 : i64} {
  func.func @kernel(%arg0: i32, %arg1: i32, %arg2: memref<1x16x1x1024xbf16, #tpu.memory_space<vmem>>, %arg3: memref<2x32x32xbf16, #tpu.memory_space<vmem>>, %arg4: memref<2x32x1xf32, #tpu.memory_space<vmem>>, %arg5: memref<1x32x128xf32, #tpu.memory_space<vmem>>) attributes {dimension_semantics = [#tpu.dimension_semantics<parallel>, #tpu.dimension_semantics<parallel>], iteration_bounds = array<i64: 2, 1>, scalar_prefetch = 0 : i64, scratch_operands = 0 : i64, tpu.core_type = #tpu.core_type<tc>, window_params = [{transform_indices = @transform_0, window_bounds = array<i64: 1, 16, 1, 1024>}, {pipeline_mode = #tpu.pipeline_mode<synchronous>, transform_indices = @transform_1, window_bounds = array<i64: 2, 32, 32>}, {pipeline_mode = #tpu.pipeline_mode<synchronous>, transform_indices = @transform_2, window_bounds = array<i64: 2, 32, 1>}, {transform_indices = @transform_3, window_bounds = array<i64: 1, 32, 128>}]} {
    %c0 = arith.constant 0 : index
    %c0_0 = arith.constant 0 : index
    %c0_1 = arith.constant 0 : index
    %0 = vector.load %arg3[%c0, %c0_0, %c0_1] : memref<2x32x32xbf16, #tpu.memory_space<vmem>>, vector<2x32x32xbf16>
    %c0_2 = arith.constant 0 : index
    %c0_3 = arith.constant 0 : index
    %c0_4 = arith.constant 0 : index
    %1 = vector.load %arg4[%c0_2, %c0_3, %c0_4] : memref<2x32x1xf32, #tpu.memory_space<vmem>>, vector<2x32x1xf32>
    %2 = vector.extract_strided_slice %0 {offsets = [0, 0, 0], sizes = [1, 16, 16], strides = [1, 1, 1]} : vector<2x32x32xbf16> to vector<1x16x16xbf16>
    %3 = vector.shape_cast %2 : vector<1x16x16xbf16> to vector<16x16xbf16>
    %4 = vector.extract_strided_slice %0 {offsets = [1, 0, 0], sizes = [1, 32, 16], strides = [1, 1, 1]} : vector<2x32x32xbf16> to vector<1x32x16xbf16>
    %5 = vector.shape_cast %4 : vector<1x32x16xbf16> to vector<32x16xbf16>
    %6 = vector.extract_strided_slice %1 {offsets = [1, 0, 0], sizes = [1, 32, 1], strides = [1, 1, 1]} : vector<2x32x1xf32> to vector<1x32x1xf32>
    %7 = vector.shape_cast %6 : vector<1x32x1xf32> to vector<32x1xf32>
    %8 = vector.shape_cast %7 : vector<32x1xf32> to vector<32x1xf32>
    %9 = vector.broadcast %8 : vector<32x1xf32> to vector<32x1024xf32>
    %cst = arith.constant 0.000000e+00 : f32
    %10 = vector.broadcast %cst : f32 to vector<32x128xf32>
    %c0_5 = arith.constant 0 : index
    %c0_6 = arith.constant 0 : index
    %c0_7 = arith.constant 0 : index
    %c0_8 = arith.constant 0 : index
    %11 = vector.load %arg2[%c0_5, %c0_6, %c0_7, %c0_8] : memref<1x16x1x1024xbf16, #tpu.memory_space<vmem>>, vector<1x16x1x1024xbf16>
    %12 = vector.shape_cast %11 : vector<1x16x1x1024xbf16> to vector<16x1024xbf16>
    %cst_9 = arith.constant dense<0.000000e+00> : vector<16x1024xf32>
    %13 = tpu.matmul %3, %12, %cst_9 {dimension_numbers = #tpu.dot_dimension_numbers<[1], [0], [0], [1], [0, 0, 1, 1], [], []>} : vector<16x16xbf16>, vector<16x1024xbf16>, vector<16x1024xf32> -> vector<16x1024xf32>
    %cst_10 = arith.constant 0.000000e+00 : f32
    %14 = vector.broadcast %cst_10 : f32 to vector<16x1024xf32>
    %15 = arith.maximumf %13, %14 : vector<16x1024xf32>
    %16 = arith.truncf %15 : vector<16x1024xf32> to vector<16x1024xbf16>
    %cst_11 = arith.constant dense<0.000000e+00> : vector<32x1024xf32>
    %17 = tpu.matmul %5, %16, %cst_11 {dimension_numbers = #tpu.dot_dimension_numbers<[1], [0], [0], [1], [0, 0, 1, 1], [], []>} : vector<32x16xbf16>, vector<16x1024xbf16>, vector<32x1024xf32> -> vector<32x1024xf32>
    %18 = arith.addf %17, %9 : vector<32x1024xf32>
    %19 = vector.extract_strided_slice %18 {offsets = [0, 0], sizes = [32, 128], strides = [1, 1]} : vector<32x1024xf32> to vector<32x128xf32>
    %20 = arith.maximumf %10, %19 : vector<32x128xf32>
    %21 = vector.extract_strided_slice %18 {offsets = [0, 128], sizes = [32, 128], strides = [1, 1]} : vector<32x1024xf32> to vector<32x128xf32>
    %22 = arith.maximumf %20, %21 : vector<32x128xf32>
    %23 = vector.extract_strided_slice %18 {offsets = [0, 256], sizes = [32, 128], strides = [1, 1]} : vector<32x1024xf32> to vector<32x128xf32>
    %24 = arith.maximumf %22, %23 : vector<32x128xf32>
    %25 = vector.extract_strided_slice %18 {offsets = [0, 384], sizes = [32, 128], strides = [1, 1]} : vector<32x1024xf32> to vector<32x128xf32>
    %26 = arith.maximumf %24, %25 : vector<32x128xf32>
    %27 = vector.extract_strided_slice %18 {offsets = [0, 512], sizes = [32, 128], strides = [1, 1]} : vector<32x1024xf32> to vector<32x128xf32>
    %28 = arith.maximumf %26, %27 : vector<32x128xf32>
    %29 = vector.extract_strided_slice %18 {offsets = [0, 640], sizes = [32, 128], strides = [1, 1]} : vector<32x1024xf32> to vector<32x128xf32>
    %30 = arith.maximumf %28, %29 : vector<32x128xf32>
    %31 = vector.extract_strided_slice %18 {offsets = [0, 768], sizes = [32, 128], strides = [1, 1]} : vector<32x1024xf32> to vector<32x128xf32>
    %32 = arith.maximumf %30, %31 : vector<32x128xf32>
    %33 = vector.extract_strided_slice %18 {offsets = [0, 896], sizes = [32, 128], strides = [1, 1]} : vector<32x1024xf32> to vector<32x128xf32>
    %34 = arith.maximumf %32, %33 : vector<32x128xf32>
    %c0_12 = arith.constant 0 : index
    %c0_13 = arith.constant 0 : index
    %c0_14 = arith.constant 0 : index
    %35 = vector.load %arg5[%c0_12, %c0_13, %c0_14] : memref<1x32x128xf32, #tpu.memory_space<vmem>>, vector<1x32x128xf32>
    %36 = vector.shape_cast %35 : vector<1x32x128xf32> to vector<32x128xf32>
    %37 = vector.shape_cast %34 : vector<32x128xf32> to vector<1x32x128xf32>
    tpu.vector_store %arg5[%c0_12, %c0_13, %c0_14], %37 {strides = array<i32>} : memref<1x32x128xf32, #tpu.memory_space<vmem>>, vector<1x32x128xf32>,
    return
  }
  func.func @transform_0(%arg0: i32, %arg1: i32) -> (i32, i32, i32, i32) {
    %c0_i32 = arith.constant 0 : i32
    %c0_i32_0 = arith.constant 0 : i32
    %c0_i32_1 = arith.constant 0 : i32
    return %arg0, %c0_i32, %arg1, %c0_i32_0 : i32, i32, i32, i32
  }
  func.func @transform_1(%arg0: i32, %arg1: i32) -> (i32, i32, i32) {
    %c0_i32 = arith.constant 0 : i32
    %c0_i32_0 = arith.constant 0 : i32
    %c0_i32_1 = arith.constant 0 : i32
    %c0_i32_2 = arith.constant 0 : i32
    return %c0_i32, %c0_i32_0, %c0_i32_1 : i32, i32, i32
  }
  func.func @transform_2(%arg0: i32, %arg1: i32) -> (i32, i32, i32) {
    %c0_i32 = arith.constant 0 : i32
    %c0_i32_0 = arith.constant 0 : i32
    %c0_i32_1 = arith.constant 0 : i32
    %c0_i32_2 = arith.constant 0 : i32
    return %c0_i32, %c0_i32_0, %c0_i32_1 : i32, i32, i32
  }
  func.func @transform_3(%arg0: i32, %arg1: i32) -> (i32, i32, i32) {
    %c0_i32 = arith.constant 0 : i32
    %c0_i32_0 = arith.constant 0 : i32
    return %arg0, %c0_i32, %arg1 : i32, i32, i32
  }
}

</mosaic_0001>

<llo_original>
// kernel: tpu_custom_call.1
$region0: #{tpu_custom_call.1}
  #allocation0 [shape = 'u32[]', space=smem, size = 0x4, offset = 0x4, fixed_abs, tag = 'smem constant byte address 0x4 - core index']
  #allocation1 [shape = 'u32[144,128]{1,0:T(1,128)}', space=vmem, size = 0x12000, scoped, tag = 'internal scratch']
  %s0 = inlined_call_operand.vmem [shape: bf16[2,16,1,1024], index: 0, kind: input, shape index: {}]
  %s1 = inlined_call_operand.vmem [shape: bf16[2,32,32], index: 1, kind: input, shape index: {}]
  %s2 = inlined_call_operand.vmem [shape: f32[2,32,1], index: 2, kind: input, shape index: {}]
  %s3 = inlined_call_operand.hbm [shape: f32[2,32,128], index: 3, kind: output, shape index: {}]
  %s4 = sld [smem:[#allocation0]]
  $region45: #{tpu_custom_call.1} parent=0
    _
  %s6 = ssub.s32 1, %s4
  %s7 = scalar_select 0, %s6, %s4
  $region1: #{tpu_custom_call.1} parent=0
    #allocation2 [shape = 'u8[32768]{0}', space=vmem, size = 0x8000, scoped, tag = 'output window, operand 0']
    #allocation3 [shape = 's32[2]{0}', space=sflag, size = 0x8, scoped, tag = 'scoped memory for tpu_custom_call.1']
    %8 = vsyncpa [#allocation3], 0
    %s9 = scalar_lea.sflag [#allocation3], 1
    %10 = vsyncpa %s9, 0
    loop: start=0, step=1, limit=4
    $region2: #{tpu_custom_call.1} parent=1 // loop_pre_header
      _
    $region3: #{tpu_custom_call.1} parent=1 // loop_header
      %s12 = sphi 0, %s16
      %p13 = scmp.ge.s32.totalorder %s12, 4
      %s19 = sphi 0, %s31
      %s20 = sphi 0, %s27
      %s21 = sphi 0, %s19
      %s22 = sphi 0, %s20
      %s23 = sphi 0, %s21
      %s24 = sphi 0, %s22
      %s36 = sphi 0, %s38
      %s39 = sphi 0, %s36
      %s40 = sphi 0, %s39
      %s56 = sphi 0, %s40
      %s60 = sphi 0, %s60
      %s62 = sphi 0, %s60
      %s63 = sphi 0, %s62
      %s77 = sphi 0, %s63
      %s81 = sphi 0, %s81
      %s83 = sphi 0, %s81
      %s84 = sphi 0, %s83
      %s98 = sphi 0, %s84
      %s106 = sphi 0, %s108
      %s109 = sphi 0, %s106
      %s110 = sphi 0, %s109
      %s126 = sphi 0, %s110
    $region4: #{tpu_custom_call.1} parent=1 // loop_header_branch
      %15 = sbr.rel (%p13) target = $region8
    $region5: #{tpu_custom_call.1} parent=1 // loop_body
      %s17 = ssub.s32 %s12, 1
      %s18 = ssub.s32 %s12, 2
      %s25 = sadd.s32 1, %s20
      %p26 = scmp.ge.s32.totalorder %s25, 1
      %s27 = scalar_select %p26, 0, %s25
      %s28 = sadd.s32 1, %s19
      %s29 = scalar_select %p26, %s28, %s19
      %p30 = scmp.ge.s32.totalorder %s29, 2
      %s31 = scalar_select %p30, 0, %s29
      %s32 = ssub.s32 %s19, %s31
      %s33 = ssub.s32 %s20, %s27
      %s34 = sor.u32 %s32, %s33
      %p35 = scmp.eq.s32.totalorder %s34, 0
      %s37 = sadd.s32 %s36, 1
      %s38 = scalar_select %p35, %s36, %s37
      %p41 = pneg %p35
      %p42 = scmp.eq.s32.totalorder %s12, 1
      %p43 = por %p41, %p42
      %p44 = scmp.ne.s32.totalorder %s36, %s39
      %p45 = scmp.eq.s32.totalorder %s12, 0
      %p46 = por %p44, %p45
      %p47 = scmp.ne.s32.totalorder %s36, %s39
      %p48 = scmp.eq.s32.totalorder %s17, 1
      %p49 = por %p47, %p48
      %p50 = scmp.ne.s32.totalorder %s39, %s40
      %p51 = scmp.eq.s32.totalorder %s17, 0
      %p52 = por %p50, %p51
      %p53 = scmp.ne.s32.totalorder %s39, %s40
      %p54 = scmp.eq.s32.totalorder %s18, 1
      %p55 = por %p53, %p54
      %p57 = scmp.ne.s32.totalorder %s40, %s56
      %p58 = scmp.eq.s32.totalorder %s18, 0
      %p59 = por %p57, %p58
      %s61 = sadd.s32 %s60, 1
      %p64 = scmp.eq.s32.totalorder %s12, 1
      %p65 = scmp.ne.s32.totalorder %s60, %s62
      %p66 = scmp.eq.s32.totalorder %s12, 0
      %p67 = por %p65, %p66
      %p68 = scmp.ne.s32.totalorder %s60, %s62
      %p69 = scmp.eq.s32.totalorder %s17, 1
      %p70 = por %p68, %p69
      %p71 = scmp.ne.s32.totalorder %s62, %s63
      %p72 = scmp.eq.s32.totalorder %s17, 0
      %p73 = por %p71, %p72
      %p74 = scmp.ne.s32.totalorder %s62, %s63
      %p75 = scmp.eq.s32.totalorder %s18, 1
      %p76 = por %p74, %p75
      %p78 = scmp.ne.s32.totalorder %s63, %s77
      %p79 = scmp.eq.s32.totalorder %s18, 0
      %p80 = por %p78, %p79
      %s82 = sadd.s32 %s81, 1
      %p85 = scmp.eq.s32.totalorder %s12, 1
      %p86 = scmp.ne.s32.totalorder %s81, %s83
      %p87 = scmp.eq.s32.totalorder %s12, 0
      %p88 = por %p86, %p87
      %p89 = scmp.ne.s32.totalorder %s81, %s83
      %p90 = scmp.eq.s32.totalorder %s17, 1
      %p91 = por %p89, %p90
      %p92 = scmp.ne.s32.totalorder %s83, %s84
      %p93 = scmp.eq.s32.totalorder %s17, 0
      %p94 = por %p92, %p93
      %p95 = scmp.ne.s32.totalorder %s83, %s84
      %p96 = scmp.eq.s32.totalorder %s18, 1
      %p97 = por %p95, %p96
      %p99 = scmp.ne.s32.totalorder %s84, %s98
      %p100 = scmp.eq.s32.totalorder %s18, 0
      %p101 = por %p99, %p100
      %s102 = ssub.s32 %s19, %s31
      %s103 = ssub.s32 %s20, %s27
      %s104 = sor.u32 %s102, %s103
      %p105 = scmp.eq.s32.totalorder %s104, 0
      %s107 = sadd.s32 %s106, 1
      %s108 = scalar_select %p105, %s106, %s107
      %p111 = pneg %p105
      %p112 = scmp.eq.s32.totalorder %s12, 1
      %p113 = por %p111, %p112
      %p114 = scmp.ne.s32.totalorder %s106, %s109
      %p115 = scmp.eq.s32.totalorder %s12, 0
      %p116 = por %p114, %p115
      %p117 = scmp.ne.s32.totalorder %s106, %s109
      %p118 = scmp.eq.s32.totalorder %s17, 1
      %p119 = por %p117, %p118
      %p120 = scmp.ne.s32.totalorder %s109, %s110
      %p121 = scmp.eq.s32.totalorder %s17, 0
      %p122 = por %p120, %p121
      %p123 = scmp.ne.s32.totalorder %s109, %s110
      %p124 = scmp.eq.s32.totalorder %s18, 1
      %p125 = por %p123, %p124
      %p127 = scmp.ne.s32.totalorder %s110, %s126
      %p128 = scmp.eq.s32.totalorder %s18, 0
      %p129 = por %p127, %p128
      %p130 = scmp.le.s32.totalorder 1, %s12
      %p131 = scmp.lt.s32.totalorder %s12, 3
      %p132 = pnand %p130, %p131
      %p133 = pneg %p132
      // Predicated region
      $region9: #{tpu_custom_call.1} parent=5 // pred_check
        _
      $region10: #{tpu_custom_call.1} parent=5 // pred_check_branch
        %135 = sbr.rel (%p132) target = $region12
      $region11: #{tpu_custom_call.1} parent=5 // pred_region
        %s136 = ssub.s32 %s12, 1
        // Predicated region
        $region13: #{tpu_custom_call.1} parent=11 // pred_check
          %p137 = pneg %p73
        $region14: #{tpu_custom_call.1} parent=11 // pred_check_branch
          %139 = sbr.rel (%p137) target = $region16
        $region15: #{tpu_custom_call.1} parent=11 // pred_region
          _
        $region16: #{tpu_custom_call.1} parent=11 // pred_fallthru
          _
        // Predicated region
        $region17: #{tpu_custom_call.1} parent=11 // pred_check
          %p140 = pneg %p94
        $region18: #{tpu_custom_call.1} parent=11 // pred_check_branch
          %142 = sbr.rel (%p140) target = $region20
        $region19: #{tpu_custom_call.1} parent=11 // pred_region
          _
        $region20: #{tpu_custom_call.1} parent=11 // pred_fallthru
          _
      $region12: #{tpu_custom_call.1} parent=5 // pred_fallthru
        _
      %p143 = scmp.lt.s32.totalorder %s12, 2
      // Predicated region
      $region21: #{tpu_custom_call.1} parent=5 // pred_check
        %p144 = pneg %p143
      $region22: #{tpu_custom_call.1} parent=5 // pred_check_branch
        %146 = sbr.rel (%p144) target = $region24
      $region23: #{tpu_custom_call.1} parent=5 // pred_region
        // Predicated region
        $region25: #{tpu_custom_call.1} parent=23 // pred_check
          %p147 = pneg %p46
        $region26: #{tpu_custom_call.1} parent=23 // pred_check_branch
          %149 = sbr.rel (%p147) target = $region28
        $region27: #{tpu_custom_call.1} parent=23 // pred_region
          %p150 = scmp.lt.s32.totalorder %s19, 1
          %s151 = scalar_select %p150, %s19, 1
          %p152 = scmp.lt.s32.totalorder %s20, 0
          %s153 = scalar_select %p152, %s20, 0
          %s154 = smul.addr %s153, 8
          %s155 = smul.addr %s151, 128
          %s156 = sadd.s32 %s154, %s155
          %s157 = scalar_lea.vmem %s0, %s156
        $region28: #{tpu_custom_call.1} parent=23 // pred_fallthru
          _
      $region24: #{tpu_custom_call.1} parent=5 // pred_fallthru
        _
      %p158 = scmp.le.s32.totalorder 1, %s12
      %p159 = scmp.lt.s32.totalorder %s12, 3
      %p160 = pnand %p158, %p159
      %p161 = pneg %p160
      // Predicated region
      $region29: #{tpu_custom_call.1} parent=5 // pred_check
        _
      $region30: #{tpu_custom_call.1} parent=5 // pred_check_branch
        %163 = sbr.rel (%p160) target = $region32
      $region31: #{tpu_custom_call.1} parent=5 // pred_region
        %s164 = ssub.s32 %s12, 1
        %p165 = scmp.lt.s32.totalorder %s21, 1
        %s166 = scalar_select %p165, %s21, 1
        %p167 = scmp.lt.s32.totalorder %s22, 0
        %s168 = scalar_select %p167, %s22, 0
        %s169 = smul.addr %s168, 8
        %s170 = smul.addr %s166, 128
        %s171 = sadd.s32 %s169, %s170
        %s172 = scalar_lea.vmem %s0, %s171
        %p173 = pneg %p52
        %p174 = pneg %p49
        %p175 = pneg %p73
        %p176 = pneg %p70
        %p177 = pneg %p94
        %p178 = pneg %p91
        %p179 = pneg %p122
        %p180 = pneg %p119
        %s181 = sand.u32 %s109, 1
        %s182 = scalar_lea.sflag [#allocation3], %s181
        %s183 = sand.u32 %s109, 1
        %s184 = smul.addr %s183, 32
        %s185 = scalar_lea.vmem [#allocation2], %s184
        %p186 = scmp.lt.s32.totalorder %s21, 1
        %s187 = scalar_select %p186, %s21, 1
        %p188 = scmp.lt.s32.totalorder %s22, 0
        %s189 = scalar_select %p188, %s22, 0
        %s190 = smul.addr %s189, 8
        %s191 = smul.addr %s187, 128
        %s192 = sadd.s32 %s190, %s191
        %s193 = scalar_lea.vmem %s0, %s192
        %v195 = vld [vmem:[%s1] sm:$0xf]
        %v196 = vld [vmem:[%s1 + $0x4] sm:$0xf]
        %v197 = vld [vmem:[%s1 + $0x10] sm:$0xf]
        %v198 = vld [vmem:[%s1 + $0x14] sm:$0xf]
        %v199 = vld [vmem:[%s1 + $0x18] sm:$0xf]
        %v200 = vld [vmem:[%s1 + $0x1c] sm:$0xf]
        %v201 = vld [vmem:[%s2 + $0x20] sm:$0xff]
        %v202 = vld [vmem:[%s2 + $0x28] sm:$0xff]
        %v203 = vld [vmem:[%s2 + $0x30] sm:$0xff]
        %v204 = vld [vmem:[%s2 + $0x38] sm:$0xff]
        %206 = vset.pattern.permute.xlu0 0
        %207 = vperm.xlu0 %206, %v201
        %v208 = vpop.permute.xlu0 %207
        %211 = vset.pattern.permute.xlu0 0
        %212 = vperm.xlu0 %211, %v202
        %v213 = vpop.permute.xlu0 %212
        %216 = vset.pattern.permute.xlu0 0
        %217 = vperm.xlu0 %216, %v203
        %v218 = vpop.permute.xlu0 %217
        %221 = vset.pattern.permute.xlu0 0
        %222 = vperm.xlu0 %221, %v204
        %v223 = vpop.permute.xlu0 %222
        %v225 = vld [vmem:[%s193] sm:$0xff]
        %v226 = vld [vmem:[%s193 + $0x8] sm:$0xff]
        %v227 = vld [vmem:[%s193 + $0x10] sm:$0xff]
        %v228 = vld [vmem:[%s193 + $0x18] sm:$0xff]
        %v229 = vld [vmem:[%s193 + $0x20] sm:$0xff]
        %v230 = vld [vmem:[%s193 + $0x28] sm:$0xff]
        %v231 = vld [vmem:[%s193 + $0x30] sm:$0xff]
        %v232 = vld [vmem:[%s193 + $0x38] sm:$0xff]
        %v233 = vld [vmem:[%s193 + $0x40] sm:$0xff]
        %v234 = vld [vmem:[%s193 + $0x48] sm:$0xff]
        %v235 = vld [vmem:[%s193 + $0x50] sm:$0xff]
        %v236 = vld [vmem:[%s193 + $0x58] sm:$0xff]
        %v237 = vld [vmem:[%s193 + $0x60] sm:$0xff]
        %v238 = vld [vmem:[%s193 + $0x68] sm:$0xff]
        %v239 = vld [vmem:[%s193 + $0x70] sm:$0xff]
        %v240 = vld [vmem:[%s193 + $0x78] sm:$0xff]
        %v243 = vunpack.c.l.b16 %v195
        %v244 = vunpack.c.l.b16 %v196
        %v245 = vpack.c.b16 %v244, %v243
        %v262 = vcombine.high %v225, %v225
        %v264 = vunpack.c.l.s4 1966171168
        %v265 = vunpack.c.0.s8 %v264
        %v266 = vlaneseq
        %v267 = vshrl.u32 %v266, 7
        %v268 = vsub.s32 %v265, %v267
        %v269 = vrot.slane %v225, %v268
        %v271 = vunpack.c.l.s4 1966171168
        %v272 = vunpack.c.0.s8 %v271
        %v273 = vlaneseq
        %v274 = vshrl.u32 %v273, 7
        %v275 = vsub.s32 %v272, %v274
        %v276 = vrot.slane %v262, %v275
        %v277 = vcombine.high %v269, %v269
        %v278 = vcombine.high %v276, %v276
        %v280 = vunpack.c.l.s4 1966171168
        %v281 = vunpack.c.0.s8 %v280
        %v282 = vlaneseq
        %v283 = vshrl.u32 %v282, 7
        %v284 = vsub.s32 %v281, %v283
        %v285 = vrot.slane %v269, %v284
        %v287 = vunpack.c.l.s4 1966171168
        %v288 = vunpack.c.0.s8 %v287
        %v289 = vlaneseq
        %v290 = vshrl.u32 %v289, 7
        %v291 = vsub.s32 %v288, %v290
        %v292 = vrot.slane %v276, %v291
        %v294 = vunpack.c.l.s4 1966171168
        %v295 = vunpack.c.0.s8 %v294
        %v296 = vlaneseq
        %v297 = vshrl.u32 %v296, 7
        %v298 = vsub.s32 %v295, %v297
        %v299 = vrot.slane %v277, %v298
        %v301 = vunpack.c.l.s4 1966171168
        %v302 = vunpack.c.0.s8 %v301
        %v303 = vlaneseq
        %v304 = vshrl.u32 %v303, 7
        %v305 = vsub.s32 %v302, %v304
        %v306 = vrot.slane %v278, %v305
        %v307 = vcombine.high %v285, %v285
        %v308 = vcombine.high %v292, %v292
        %v309 = vcombine.high %v299, %v299
        %v310 = vcombine.high %v306, %v306
        %v311 = vcombine.high %v226, %v226
        %v313 = vunpack.c.l.s4 1966171168
        %v314 = vunpack.c.0.s8 %v313
        %v315 = vlaneseq
        %v316 = vshrl.u32 %v315, 7
        %v317 = vsub.s32 %v314, %v316
        %v318 = vrot.slane %v226, %v317
        %v320 = vunpack.c.l.s4 1966171168
        %v321 = vunpack.c.0.s8 %v320
        %v322 = vlaneseq
        %v323 = vshrl.u32 %v322, 7
        %v324 = vsub.s32 %v321, %v323
        %v325 = vrot.slane %v311, %v324
        %v326 = vcombine.high %v318, %v318
        %v327 = vcombine.high %v325, %v325
        %v329 = vunpack.c.l.s4 1966171168
        %v330 = vunpack.c.0.s8 %v329
        %v331 = vlaneseq
        %v332 = vshrl.u32 %v331, 7
        %v333 = vsub.s32 %v330, %v332
        %v334 = vrot.slane %v318, %v333
        %v336 = vunpack.c.l.s4 1966171168
        %v337 = vunpack.c.0.s8 %v336
        %v338 = vlaneseq
        %v339 = vshrl.u32 %v338, 7
        %v340 = vsub.s32 %v337, %v339
        %v341 = vrot.slane %v325, %v340
        %v343 = vunpack.c.l.s4 1966171168
        %v344 = vunpack.c.0.s8 %v343
        %v345 = vlaneseq
        %v346 = vshrl.u32 %v345, 7
        %v347 = vsub.s32 %v344, %v346
        %v348 = vrot.slane %v326, %v347
        %v350 = vunpack.c.l.s4 1966171168
        %v351 = vunpack.c.0.s8 %v350
        %v352 = vlaneseq
        %v353 = vshrl.u32 %v352, 7
        %v354 = vsub.s32 %v351, %v353
        %v355 = vrot.slane %v327, %v354
        %v356 = vcombine.high %v334, %v334
        %v357 = vcombine.high %v341, %v341
        %v358 = vcombine.high %v348, %v348
        %v359 = vcombine.high %v355, %v355
        %v360 = vcombine.high %v227, %v227
        %v362 = vunpack.c.l.s4 1966171168
        %v363 = vunpack.c.0.s8 %v362
        %v364 = vlaneseq
        %v365 = vshrl.u32 %v364, 7
        %v366 = vsub.s32 %v363, %v365
        %v367 = vrot.slane %v227, %v366
        %v369 = vunpack.c.l.s4 1966171168
        %v370 = vunpack.c.0.s8 %v369
        %v371 = vlaneseq
        %v372 = vshrl.u32 %v371, 7
        %v373 = vsub.s32 %v370, %v372
        %v374 = vrot.slane %v360, %v373
        %v375 = vcombine.high %v367, %v367
        %v376 = vcombine.high %v374, %v374
        %v378 = vunpack.c.l.s4 1966171168
        %v379 = vunpack.c.0.s8 %v378
        %v380 = vlaneseq
        %v381 = vshrl.u32 %v380, 7
        %v382 = vsub.s32 %v379, %v381
        %v383 = vrot.slane %v367, %v382
        %v385 = vunpack.c.l.s4 1966171168
        %v386 = vunpack.c.0.s8 %v385
        %v387 = vlaneseq
        %v388 = vshrl.u32 %v387, 7
        %v389 = vsub.s32 %v386, %v388
        %v390 = vrot.slane %v374, %v389
        %v392 = vunpack.c.l.s4 1966171168
        %v393 = vunpack.c.0.s8 %v392
        %v394 = vlaneseq
        %v395 = vshrl.u32 %v394, 7
        %v396 = vsub.s32 %v393, %v395
        %v397 = vrot.slane %v375, %v396
        %v399 = vunpack.c.l.s4 1966171168
        %v400 = vunpack.c.0.s8 %v399
        %v401 = vlaneseq
        %v402 = vshrl.u32 %v401, 7
        %v403 = vsub.s32 %v400, %v402
        %v404 = vrot.slane %v376, %v403
        %v405 = vcombine.high %v383, %v383
        %v406 = vcombine.high %v390, %v390
        %v407 = vcombine.high %v397, %v397
        %v408 = vcombine.high %v404, %v404
        %v409 = vcombine.high %v228, %v228
        %v411 = vunpack.c.l.s4 1966171168
        %v412 = vunpack.c.0.s8 %v411
        %v413 = vlaneseq
        %v414 = vshrl.u32 %v413, 7
        %v415 = vsub.s32 %v412, %v414
        %v416 = vrot.slane %v228, %v415
        %v418 = vunpack.c.l.s4 1966171168
        %v419 = vunpack.c.0.s8 %v418
        %v420 = vlaneseq
        %v421 = vshrl.u32 %v420, 7
        %v422 = vsub.s32 %v419, %v421
        %v423 = vrot.slane %v409, %v422
        %v424 = vcombine.high %v416, %v416
        %v425 = vcombine.high %v423, %v423
        %v427 = vunpack.c.l.s4 1966171168
        %v428 = vunpack.c.0.s8 %v427
        %v429 = vlaneseq
        %v430 = vshrl.u32 %v429, 7
        %v431 = vsub.s32 %v428, %v430
        %v432 = vrot.slane %v416, %v431
        %v434 = vunpack.c.l.s4 1966171168
        %v435 = vunpack.c.0.s8 %v434
        %v436 = vlaneseq
        %v437 = vshrl.u32 %v436, 7
        %v438 = vsub.s32 %v435, %v437
        %v439 = vrot.slane %v423, %v438
        %v441 = vunpack.c.l.s4 1966171168
        %v442 = vunpack.c.0.s8 %v441
        %v443 = vlaneseq
        %v444 = vshrl.u32 %v443, 7
        %v445 = vsub.s32 %v442, %v444
        %v446 = vrot.slane %v424, %v445
        %v448 = vunpack.c.l.s4 1966171168
        %v449 = vunpack.c.0.s8 %v448
        %v450 = vlaneseq
        %v451 = vshrl.u32 %v450, 7
        %v452 = vsub.s32 %v449, %v451
        %v453 = vrot.slane %v425, %v452
        %v454 = vcombine.high %v432, %v432
        %v455 = vcombine.high %v439, %v439
        %v456 = vcombine.high %v446, %v446
        %v457 = vcombine.high %v453, %v453
        %v458 = vcombine.high %v229, %v229
        %v460 = vunpack.c.l.s4 1966171168
        %v461 = vunpack.c.0.s8 %v460
        %v462 = vlaneseq
        %v463 = vshrl.u32 %v462, 7
        %v464 = vsub.s32 %v461, %v463
        %v465 = vrot.slane %v229, %v464
        %v467 = vunpack.c.l.s4 1966171168
        %v468 = vunpack.c.0.s8 %v467
        %v469 = vlaneseq
        %v470 = vshrl.u32 %v469, 7
        %v471 = vsub.s32 %v468, %v470
        %v472 = vrot.slane %v458, %v471
        %v473 = vcombine.high %v465, %v465
        %v474 = vcombine.high %v472, %v472
        %v476 = vunpack.c.l.s4 1966171168
        %v477 = vunpack.c.0.s8 %v476
        %v478 = vlaneseq
        %v479 = vshrl.u32 %v478, 7
        %v480 = vsub.s32 %v477, %v479
        %v481 = vrot.slane %v465, %v480
        %v483 = vunpack.c.l.s4 1966171168
        %v484 = vunpack.c.0.s8 %v483
        %v485 = vlaneseq
        %v486 = vshrl.u32 %v485, 7
        %v487 = vsub.s32 %v484, %v486
        %v488 = vrot.slane %v472, %v487
        %v490 = vunpack.c.l.s4 1966171168
        %v491 = vunpack.c.0.s8 %v490
        %v492 = vlaneseq
        %v493 = vshrl.u32 %v492, 7
        %v494 = vsub.s32 %v491, %v493
        %v495 = vrot.slane %v473, %v494
        %v497 = vunpack.c.l.s4 1966171168
        %v498 = vunpack.c.0.s8 %v497
        %v499 = vlaneseq
        %v500 = vshrl.u32 %v499, 7
        %v501 = vsub.s32 %v498, %v500
        %v502 = vrot.slane %v474, %v501
        %v503 = vcombine.high %v481, %v481
        %v504 = vcombine.high %v488, %v488
        %v505 = vcombine.high %v495, %v495
        %v506 = vcombine.high %v502, %v502
        %v507 = vcombine.high %v230, %v230
        %v509 = vunpack.c.l.s4 1966171168
        %v510 = vunpack.c.0.s8 %v509
        %v511 = vlaneseq
        %v512 = vshrl.u32 %v511, 7
        %v513 = vsub.s32 %v510, %v512
        %v514 = vrot.slane %v230, %v513
        %v516 = vunpack.c.l.s4 1966171168
        %v517 = vunpack.c.0.s8 %v516
        %v518 = vlaneseq
        %v519 = vshrl.u32 %v518, 7
        %v520 = vsub.s32 %v517, %v519
        %v521 = vrot.slane %v507, %v520
        %v522 = vcombine.high %v514, %v514
        %v523 = vcombine.high %v521, %v521
        %v525 = vunpack.c.l.s4 1966171168
        %v526 = vunpack.c.0.s8 %v525
        %v527 = vlaneseq
        %v528 = vshrl.u32 %v527, 7
        %v529 = vsub.s32 %v526, %v528
        %v530 = vrot.slane %v514, %v529
        %v532 = vunpack.c.l.s4 1966171168
        %v533 = vunpack.c.0.s8 %v532
        %v534 = vlaneseq
        %v535 = vshrl.u32 %v534, 7
        %v536 = vsub.s32 %v533, %v535
        %v537 = vrot.slane %v521, %v536
        %v539 = vunpack.c.l.s4 1966171168
        %v540 = vunpack.c.0.s8 %v539
        %v541 = vlaneseq
        %v542 = vshrl.u32 %v541, 7
        %v543 = vsub.s32 %v540, %v542
        %v544 = vrot.slane %v522, %v543
        %v546 = vunpack.c.l.s4 1966171168
        %v547 = vunpack.c.0.s8 %v546
        %v548 = vlaneseq
        %v549 = vshrl.u32 %v548, 7
        %v550 = vsub.s32 %v547, %v549
        %v551 = vrot.slane %v523, %v550
        %v552 = vcombine.high %v530, %v530
        %v553 = vcombine.high %v537, %v537
        %v554 = vcombine.high %v544, %v544
        %v555 = vcombine.high %v551, %v551
        %v556 = vcombine.high %v231, %v231
        %v558 = vunpack.c.l.s4 1966171168
        %v559 = vunpack.c.0.s8 %v558
        %v560 = vlaneseq
        %v561 = vshrl.u32 %v560, 7
        %v562 = vsub.s32 %v559, %v561
        %v563 = vrot.slane %v231, %v562
        %v565 = vunpack.c.l.s4 1966171168
        %v566 = vunpack.c.0.s8 %v565
        %v567 = vlaneseq
        %v568 = vshrl.u32 %v567, 7
        %v569 = vsub.s32 %v566, %v568
        %v570 = vrot.slane %v556, %v569
        %v571 = vcombine.high %v563, %v563
        %v572 = vcombine.high %v570, %v570
        %v574 = vunpack.c.l.s4 1966171168
        %v575 = vunpack.c.0.s8 %v574
        %v576 = vlaneseq
        %v577 = vshrl.u32 %v576, 7
        %v578 = vsub.s32 %v575, %v577
        %v579 = vrot.slane %v563, %v578
        %v581 = vunpack.c.l.s4 1966171168
        %v582 = vunpack.c.0.s8 %v581
        %v583 = vlaneseq
        %v584 = vshrl.u32 %v583, 7
        %v585 = vsub.s32 %v582, %v584
        %v586 = vrot.slane %v570, %v585
        %v588 = vunpack.c.l.s4 1966171168
        %v589 = vunpack.c.0.s8 %v588
        %v590 = vlaneseq
        %v591 = vshrl.u32 %v590, 7
        %v592 = vsub.s32 %v589, %v591
        %v593 = vrot.slane %v571, %v592
        %v595 = vunpack.c.l.s4 1966171168
        %v596 = vunpack.c.0.s8 %v595
        %v597 = vlaneseq
        %v598 = vshrl.u32 %v597, 7
        %v599 = vsub.s32 %v596, %v598
        %v600 = vrot.slane %v572, %v599
        %v601 = vcombine.high %v579, %v579
        %v602 = vcombine.high %v586, %v586
        %v603 = vcombine.high %v593, %v593
        %v604 = vcombine.high %v600, %v600
        %v605 = vcombine.high %v232, %v232
        %v607 = vunpack.c.l.s4 1966171168
        %v608 = vunpack.c.0.s8 %v607
        %v609 = vlaneseq
        %v610 = vshrl.u32 %v609, 7
        %v611 = vsub.s32 %v608, %v610
        %v612 = vrot.slane %v232, %v611
        %v614 = vunpack.c.l.s4 1966171168
        %v615 = vunpack.c.0.s8 %v614
        %v616 = vlaneseq
        %v617 = vshrl.u32 %v616, 7
        %v618 = vsub.s32 %v615, %v617
        %v619 = vrot.slane %v605, %v618
        %v620 = vcombine.high %v612, %v612
        %v621 = vcombine.high %v619, %v619
        %v623 = vunpack.c.l.s4 1966171168
        %v624 = vunpack.c.0.s8 %v623
        %v625 = vlaneseq
        %v626 = vshrl.u32 %v625, 7
        %v627 = vsub.s32 %v624, %v626
        %v628 = vrot.slane %v612, %v627
        %v630 = vunpack.c.l.s4 1966171168
        %v631 = vunpack.c.0.s8 %v630
        %v632 = vlaneseq
        %v633 = vshrl.u32 %v632, 7
        %v634 = vsub.s32 %v631, %v633
        %v635 = vrot.slane %v619, %v634
        %v637 = vunpack.c.l.s4 1966171168
        %v638 = vunpack.c.0.s8 %v637
        %v639 = vlaneseq
        %v640 = vshrl.u32 %v639, 7
        %v641 = vsub.s32 %v638, %v640
        %v642 = vrot.slane %v620, %v641
        %v644 = vunpack.c.l.s4 1966171168
        %v645 = vunpack.c.0.s8 %v644
        %v646 = vlaneseq
        %v647 = vshrl.u32 %v646, 7
        %v648 = vsub.s32 %v645, %v647
        %v649 = vrot.slane %v621, %v648
        %v650 = vcombine.high %v628, %v628
        %v651 = vcombine.high %v635, %v635
        %v652 = vcombine.high %v642, %v642
        %v653 = vcombine.high %v649, %v649
        %v654 = vcombine.high %v233, %v233
        %v656 = vunpack.c.l.s4 1966171168
        %v657 = vunpack.c.0.s8 %v656
        %v658 = vlaneseq
        %v659 = vshrl.u32 %v658, 7
        %v660 = vsub.s32 %v657, %v659
        %v661 = vrot.slane %v233, %v660
        %v663 = vunpack.c.l.s4 1966171168
        %v664 = vunpack.c.0.s8 %v663
        %v665 = vlaneseq
        %v666 = vshrl.u32 %v665, 7
        %v667 = vsub.s32 %v664, %v666
        %v668 = vrot.slane %v654, %v667
        %v669 = vcombine.high %v661, %v661
        %v670 = vcombine.high %v668, %v668
        %v672 = vunpack.c.l.s4 1966171168
        %v673 = vunpack.c.0.s8 %v672
        %v674 = vlaneseq
        %v675 = vshrl.u32 %v674, 7
        %v676 = vsub.s32 %v673, %v675
        %v677 = vrot.slane %v661, %v676
        %v679 = vunpack.c.l.s4 1966171168
        %v680 = vunpack.c.0.s8 %v679
        %v681 = vlaneseq
        %v682 = vshrl.u32 %v681, 7
        %v683 = vsub.s32 %v680, %v682
        %v684 = vrot.slane %v668, %v683
        %v686 = vunpack.c.l.s4 1966171168
        %v687 = vunpack.c.0.s8 %v686
        %v688 = vlaneseq
        %v689 = vshrl.u32 %v688, 7
        %v690 = vsub.s32 %v687, %v689
        %v691 = vrot.slane %v669, %v690
        %v693 = vunpack.c.l.s4 1966171168
        %v694 = vunpack.c.0.s8 %v693
        %v695 = vlaneseq
        %v696 = vshrl.u32 %v695, 7
        %v697 = vsub.s32 %v694, %v696
        %v698 = vrot.slane %v670, %v697
        %v699 = vcombine.high %v677, %v677
        %v700 = vcombine.high %v684, %v684
        %v701 = vcombine.high %v691, %v691
        %v702 = vcombine.high %v698, %v698
        %v703 = vcombine.high %v234, %v234
        %v705 = vunpack.c.l.s4 1966171168
        %v706 = vunpack.c.0.s8 %v705
        %v707 = vlaneseq
        %v708 = vshrl.u32 %v707, 7
        %v709 = vsub.s32 %v706, %v708
        %v710 = vrot.slane %v234, %v709
        %v712 = vunpack.c.l.s4 1966171168
        %v713 = vunpack.c.0.s8 %v712
        %v714 = vlaneseq
        %v715 = vshrl.u32 %v714, 7
        %v716 = vsub.s32 %v713, %v715
        %v717 = vrot.slane %v703, %v716
        %v718 = vcombine.high %v710, %v710
        %v719 = vcombine.high %v717, %v717
        %v721 = vunpack.c.l.s4 1966171168
        %v722 = vunpack.c.0.s8 %v721
        %v723 = vlaneseq
        %v724 = vshrl.u32 %v723, 7
        %v725 = vsub.s32 %v722, %v724
        %v726 = vrot.slane %v710, %v725
        %v728 = vunpack.c.l.s4 1966171168
        %v729 = vunpack.c.0.s8 %v728
        %v730 = vlaneseq
        %v731 = vshrl.u32 %v730, 7
        %v732 = vsub.s32 %v729, %v731
        %v733 = vrot.slane %v717, %v732
        %v735 = vunpack.c.l.s4 1966171168
        %v736 = vunpack.c.0.s8 %v735
        %v737 = vlaneseq
        %v738 = vshrl.u32 %v737, 7
        %v739 = vsub.s32 %v736, %v738
        %v740 = vrot.slane %v718, %v739
        %v742 = vunpack.c.l.s4 1966171168
        %v743 = vunpack.c.0.s8 %v742
        %v744 = vlaneseq
        %v745 = vshrl.u32 %v744, 7
        %v746 = vsub.s32 %v743, %v745
        %v747 = vrot.slane %v719, %v746
        %v748 = vcombine.high %v726, %v726
        %v749 = vcombine.high %v733, %v733
        %v750 = vcombine.high %v740, %v740
        %v751 = vcombine.high %v747, %v747
        %v752 = vcombine.high %v235, %v235
        %v754 = vunpack.c.l.s4 1966171168
        %v755 = vunpack.c.0.s8 %v754
        %v756 = vlaneseq
        %v757 = vshrl.u32 %v756, 7
        %v758 = vsub.s32 %v755, %v757
        %v759 = vrot.slane %v235, %v758
        %v761 = vunpack.c.l.s4 1966171168
        %v762 = vunpack.c.0.s8 %v761
        %v763 = vlaneseq
        %v764 = vshrl.u32 %v763, 7
        %v765 = vsub.s32 %v762, %v764
        %v766 = vrot.slane %v752, %v765
        %v767 = vcombine.high %v759, %v759
        %v768 = vcombine.high %v766, %v766
        %v770 = vunpack.c.l.s4 1966171168
        %v771 = vunpack.c.0.s8 %v770
        %v772 = vlaneseq
        %v773 = vshrl.u32 %v772, 7
        %v774 = vsub.s32 %v771, %v773
        %v775 = vrot.slane %v759, %v774
        %v777 = vunpack.c.l.s4 1966171168
        %v778 = vunpack.c.0.s8 %v777
        %v779 = vlaneseq
        %v780 = vshrl.u32 %v779, 7
        %v781 = vsub.s32 %v778, %v780
        %v782 = vrot.slane %v766, %v781
        %v784 = vunpack.c.l.s4 1966171168
        %v785 = vunpack.c.0.s8 %v784
        %v786 = vlaneseq
        %v787 = vshrl.u32 %v786, 7
        %v788 = vsub.s32 %v785, %v787
        %v789 = vrot.slane %v767, %v788
        %v791 = vunpack.c.l.s4 1966171168
        %v792 = vunpack.c.0.s8 %v791
        %v793 = vlaneseq
        %v794 = vshrl.u32 %v793, 7
        %v795 = vsub.s32 %v792, %v794
        %v796 = vrot.slane %v768, %v795
        %v797 = vcombine.high %v775, %v775
        %v798 = vcombine.high %v782, %v782
        %v799 = vcombine.high %v789, %v789
        %v800 = vcombine.high %v796, %v796
        %v801 = vcombine.high %v236, %v236
        %v803 = vunpack.c.l.s4 1966171168
        %v804 = vunpack.c.0.s8 %v803
        %v805 = vlaneseq
        %v806 = vshrl.u32 %v805, 7
        %v807 = vsub.s32 %v804, %v806
        %v808 = vrot.slane %v236, %v807
        %v810 = vunpack.c.l.s4 1966171168
        %v811 = vunpack.c.0.s8 %v810
        %v812 = vlaneseq
        %v813 = vshrl.u32 %v812, 7
        %v814 = vsub.s32 %v811, %v813
        %v815 = vrot.slane %v801, %v814
        %v816 = vcombine.high %v808, %v808
        %v817 = vcombine.high %v815, %v815
        %v819 = vunpack.c.l.s4 1966171168
        %v820 = vunpack.c.0.s8 %v819
        %v821 = vlaneseq
        %v822 = vshrl.u32 %v821, 7
        %v823 = vsub.s32 %v820, %v822
        %v824 = vrot.slane %v808, %v823
        %v826 = vunpack.c.l.s4 1966171168
        %v827 = vunpack.c.0.s8 %v826
        %v828 = vlaneseq
        %v829 = vshrl.u32 %v828, 7
        %v830 = vsub.s32 %v827, %v829
        %v831 = vrot.slane %v815, %v830
        %v833 = vunpack.c.l.s4 1966171168
        %v834 = vunpack.c.0.s8 %v833
        %v835 = vlaneseq
        %v836 = vshrl.u32 %v835, 7
        %v837 = vsub.s32 %v834, %v836
        %v838 = vrot.slane %v816, %v837
        %v840 = vunpack.c.l.s4 1966171168
        %v841 = vunpack.c.0.s8 %v840
        %v842 = vlaneseq
        %v843 = vshrl.u32 %v842, 7
        %v844 = vsub.s32 %v841, %v843
        %v845 = vrot.slane %v817, %v844
        %v846 = vcombine.high %v824, %v824
        %v847 = vcombine.high %v831, %v831
        %v848 = vcombine.high %v838, %v838
        %v849 = vcombine.high %v845, %v845
        %v850 = vcombine.high %v237, %v237
        %v852 = vunpack.c.l.s4 1966171168
        %v853 = vunpack.c.0.s8 %v852
        %v854 = vlaneseq
        %v855 = vshrl.u32 %v854, 7
        %v856 = vsub.s32 %v853, %v855
        %v857 = vrot.slane %v237, %v856
        %v859 = vunpack.c.l.s4 1966171168
        %v860 = vunpack.c.0.s8 %v859
        %v861 = vlaneseq
        %v862 = vshrl.u32 %v861, 7
        %v863 = vsub.s32 %v860, %v862
        %v864 = vrot.slane %v850, %v863
        %v865 = vcombine.high %v857, %v857
        %v866 = vcombine.high %v864, %v864
        %v868 = vunpack.c.l.s4 1966171168
        %v869 = vunpack.c.0.s8 %v868
        %v870 = vlaneseq
        %v871 = vshrl.u32 %v870, 7
        %v872 = vsub.s32 %v869, %v871
        %v873 = vrot.slane %v857, %v872
        %v875 = vunpack.c.l.s4 1966171168
        %v876 = vunpack.c.0.s8 %v875
        %v877 = vlaneseq
        %v878 = vshrl.u32 %v877, 7
        %v879 = vsub.s32 %v876, %v878
        %v880 = vrot.slane %v864, %v879
        %v882 = vunpack.c.l.s4 1966171168
        %v883 = vunpack.c.0.s8 %v882
        %v884 = vlaneseq
        %v885 = vshrl.u32 %v884, 7
        %v886 = vsub.s32 %v883, %v885
        %v887 = vrot.slane %v865, %v886
        %v889 = vunpack.c.l.s4 1966171168
        %v890 = vunpack.c.0.s8 %v889
        %v891 = vlaneseq
        %v892 = vshrl.u32 %v891, 7
        %v893 = vsub.s32 %v890, %v892
        %v894 = vrot.slane %v866, %v893
        %v895 = vcombine.high %v873, %v873
        %v896 = vcombine.high %v880, %v880
        %v897 = vcombine.high %v887, %v887
        %v898 = vcombine.high %v894, %v894
        %v899 = vcombine.high %v238, %v238
        %v901 = vunpack.c.l.s4 1966171168
        %v902 = vunpack.c.0.s8 %v901
        %v903 = vlaneseq
        %v904 = vshrl.u32 %v903, 7
        %v905 = vsub.s32 %v902, %v904
        %v906 = vrot.slane %v238, %v905
        %v908 = vunpack.c.l.s4 1966171168
        %v909 = vunpack.c.0.s8 %v908
        %v910 = vlaneseq
        %v911 = vshrl.u32 %v910, 7
        %v912 = vsub.s32 %v909, %v911
        %v913 = vrot.slane %v899, %v912
        %v914 = vcombine.high %v906, %v906
        %v915 = vcombine.high %v913, %v913
        %v917 = vunpack.c.l.s4 1966171168
        %v918 = vunpack.c.0.s8 %v917
        %v919 = vlaneseq
        %v920 = vshrl.u32 %v919, 7
        %v921 = vsub.s32 %v918, %v920
        %v922 = vrot.slane %v906, %v921
        %v924 = vunpack.c.l.s4 1966171168
        %v925 = vunpack.c.0.s8 %v924
        %v926 = vlaneseq
        %v927 = vshrl.u32 %v926, 7
        %v928 = vsub.s32 %v925, %v927
        %v929 = vrot.slane %v913, %v928
        %v931 = vunpack.c.l.s4 1966171168
        %v932 = vunpack.c.0.s8 %v931
        %v933 = vlaneseq
        %v934 = vshrl.u32 %v933, 7
        %v935 = vsub.s32 %v932, %v934
        %v936 = vrot.slane %v914, %v935
        %v938 = vunpack.c.l.s4 1966171168
        %v939 = vunpack.c.0.s8 %v938
        %v940 = vlaneseq
        %v941 = vshrl.u32 %v940, 7
        %v942 = vsub.s32 %v939, %v941
        %v943 = vrot.slane %v915, %v942
        %v944 = vcombine.high %v922, %v922
        %v945 = vcombine.high %v929, %v929
        %v946 = vcombine.high %v936, %v936
        %v947 = vcombine.high %v943, %v943
        %v948 = vcombine.high %v239, %v239
        %v950 = vunpack.c.l.s4 1966171168
        %v951 = vunpack.c.0.s8 %v950
        %v952 = vlaneseq
        %v953 = vshrl.u32 %v952, 7
        %v954 = vsub.s32 %v951, %v953
        %v955 = vrot.slane %v239, %v954
        %v957 = vunpack.c.l.s4 1966171168
        %v958 = vunpack.c.0.s8 %v957
        %v959 = vlaneseq
        %v960 = vshrl.u32 %v959, 7
        %v961 = vsub.s32 %v958, %v960
        %v962 = vrot.slane %v948, %v961
        %v963 = vcombine.high %v955, %v955
        %v964 = vcombine.high %v962, %v962
        %v966 = vunpack.c.l.s4 1966171168
        %v967 = vunpack.c.0.s8 %v966
        %v968 = vlaneseq
        %v969 = vshrl.u32 %v968, 7
        %v970 = vsub.s32 %v967, %v969
        %v971 = vrot.slane %v955, %v970
        %v973 = vunpack.c.l.s4 1966171168
        %v974 = vunpack.c.0.s8 %v973
        %v975 = vlaneseq
        %v976 = vshrl.u32 %v975, 7
        %v977 = vsub.s32 %v974, %v976
        %v978 = vrot.slane %v962, %v977
        %v980 = vunpack.c.l.s4 1966171168
        %v981 = vunpack.c.0.s8 %v980
        %v982 = vlaneseq
        %v983 = vshrl.u32 %v982, 7
        %v984 = vsub.s32 %v981, %v983
        %v985 = vrot.slane %v963, %v984
        %v987 = vunpack.c.l.s4 1966171168
        %v988 = vunpack.c.0.s8 %v987
        %v989 = vlaneseq
        %v990 = vshrl.u32 %v989, 7
        %v991 = vsub.s32 %v988, %v990
        %v992 = vrot.slane %v964, %v991
        %v993 = vcombine.high %v971, %v971
        %v994 = vcombine.high %v978, %v978
        %v995 = vcombine.high %v985, %v985
        %v996 = vcombine.high %v992, %v992
        %v997 = vcombine.high %v240, %v240
        %v999 = vunpack.c.l.s4 1966171168
        %v1000 = vunpack.c.0.s8 %v999
        %v1001 = vlaneseq
        %v1002 = vshrl.u32 %v1001, 7
        %v1003 = vsub.s32 %v1000, %v1002
        %v1004 = vrot.slane %v240, %v1003
        %v1006 = vunpack.c.l.s4 1966171168
        %v1007 = vunpack.c.0.s8 %v1006
        %v1008 = vlaneseq
        %v1009 = vshrl.u32 %v1008, 7
        %v1010 = vsub.s32 %v1007, %v1009
        %v1011 = vrot.slane %v997, %v1010
        %v1012 = vcombine.high %v1004, %v1004
        %v1013 = vcombine.high %v1011, %v1011
        %v1015 = vunpack.c.l.s4 1966171168
        %v1016 = vunpack.c.0.s8 %v1015
        %v1017 = vlaneseq
        %v1018 = vshrl.u32 %v1017, 7
        %v1019 = vsub.s32 %v1016, %v1018
        %v1020 = vrot.slane %v1004, %v1019
        %v1022 = vunpack.c.l.s4 1966171168
        %v1023 = vunpack.c.0.s8 %v1022
        %v1024 = vlaneseq
        %v1025 = vshrl.u32 %v1024, 7
        %v1026 = vsub.s32 %v1023, %v1025
        %v1027 = vrot.slane %v1011, %v1026
        %v1029 = vunpack.c.l.s4 1966171168
        %v1030 = vunpack.c.0.s8 %v1029
        %v1031 = vlaneseq
        %v1032 = vshrl.u32 %v1031, 7
        %v1033 = vsub.s32 %v1030, %v1032
        %v1034 = vrot.slane %v1012, %v1033
        %v1036 = vunpack.c.l.s4 1966171168
        %v1037 = vunpack.c.0.s8 %v1036
        %v1038 = vlaneseq
        %v1039 = vshrl.u32 %v1038, 7
        %v1040 = vsub.s32 %v1037, %v1039
        %v1041 = vrot.slane %v1013, %v1040
        %v1042 = vcombine.high %v1020, %v1020
        %v1043 = vcombine.high %v1027, %v1027
        %v1044 = vcombine.high %v1034, %v1034
        %v1045 = vcombine.high %v1041, %v1041
        %v1046 = vunpack.c.l.b16 %v285
        %v1047 = vunpack.c.l.b16 %v299
        %v1048 = vunpack.c.l.b16 %v307
        %v1049 = vunpack.c.l.b16 %v309
        %v1050 = vunpack.c.l.b16 %v292
        %v1051 = vunpack.c.l.b16 %v306
        %v1052 = vunpack.c.l.b16 %v308
        %v1053 = vunpack.c.l.b16 %v310
        %v1054 = vunpack.c.l.b16 %v334
        %v1055 = vunpack.c.l.b16 %v348
        %v1056 = vunpack.c.l.b16 %v356
        %v1057 = vunpack.c.l.b16 %v358
        %v1058 = vunpack.c.l.b16 %v341
        %v1059 = vunpack.c.l.b16 %v355
        %v1060 = vunpack.c.l.b16 %v357
        %v1061 = vunpack.c.l.b16 %v359
        %v1062 = vunpack.c.l.b16 %v383
        %v1063 = vunpack.c.l.b16 %v397
        %v1064 = vunpack.c.l.b16 %v405
        %v1065 = vunpack.c.l.b16 %v407
        %v1066 = vunpack.c.l.b16 %v390
        %v1067 = vunpack.c.l.b16 %v404
        %v1068 = vunpack.c.l.b16 %v406
        %v1069 = vunpack.c.l.b16 %v408
        %v1070 = vunpack.c.l.b16 %v432
        %v1071 = vunpack.c.l.b16 %v446
        %v1072 = vunpack.c.l.b16 %v454
        %v1073 = vunpack.c.l.b16 %v456
        %v1074 = vunpack.c.l.b16 %v439
        %v1075 = vunpack.c.l.b16 %v453
        %v1076 = vunpack.c.l.b16 %v455
        %v1077 = vunpack.c.l.b16 %v457
        %v1078 = vunpack.c.l.b16 %v481
        %v1079 = vunpack.c.l.b16 %v495
        %v1080 = vunpack.c.l.b16 %v503
        %v1081 = vunpack.c.l.b16 %v505
        %v1082 = vunpack.c.l.b16 %v488
        %v1083 = vunpack.c.l.b16 %v502
        %v1084 = vunpack.c.l.b16 %v504
        %v1085 = vunpack.c.l.b16 %v506
        %v1086 = vunpack.c.l.b16 %v530
        %v1087 = vunpack.c.l.b16 %v544
        %v1088 = vunpack.c.l.b16 %v552
        %v1089 = vunpack.c.l.b16 %v554
        %v1090 = vunpack.c.l.b16 %v537
        %v1091 = vunpack.c.l.b16 %v551
        %v1092 = vunpack.c.l.b16 %v553
        %v1093 = vunpack.c.l.b16 %v555
        %v1094 = vunpack.c.l.b16 %v579
        %v1095 = vunpack.c.l.b16 %v593
        %v1096 = vunpack.c.l.b16 %v601
        %v1097 = vunpack.c.l.b16 %v603
        %v1098 = vunpack.c.l.b16 %v586
        %v1099 = vunpack.c.l.b16 %v600
        %v1100 = vunpack.c.l.b16 %v602
        %v1101 = vunpack.c.l.b16 %v604
        %v1102 = vunpack.c.l.b16 %v628
        %v1103 = vunpack.c.l.b16 %v642
        %v1104 = vunpack.c.l.b16 %v650
        %v1105 = vunpack.c.l.b16 %v652
        %v1106 = vunpack.c.l.b16 %v635
        %v1107 = vunpack.c.l.b16 %v649
        %v1108 = vunpack.c.l.b16 %v651
        %v1109 = vunpack.c.l.b16 %v653
        %v1110 = vunpack.c.l.b16 %v677
        %v1111 = vunpack.c.l.b16 %v691
        %v1112 = vunpack.c.l.b16 %v699
        %v1113 = vunpack.c.l.b16 %v701
        %v1114 = vunpack.c.l.b16 %v684
        %v1115 = vunpack.c.l.b16 %v698
        %v1116 = vunpack.c.l.b16 %v700
        %v1117 = vunpack.c.l.b16 %v702
        %v1118 = vunpack.c.l.b16 %v726
        %v1119 = vunpack.c.l.b16 %v740
        %v1120 = vunpack.c.l.b16 %v748
        %v1121 = vunpack.c.l.b16 %v750
        %v1122 = vunpack.c.l.b16 %v733
        %v1123 = vunpack.c.l.b16 %v747
        %v1124 = vunpack.c.l.b16 %v749
        %v1125 = vunpack.c.l.b16 %v751
        %v1126 = vunpack.c.l.b16 %v775
        %v1127 = vunpack.c.l.b16 %v789
        %v1128 = vunpack.c.l.b16 %v797
        %v1129 = vunpack.c.l.b16 %v799
        %v1130 = vunpack.c.l.b16 %v782
        %v1131 = vunpack.c.l.b16 %v796
        %v1132 = vunpack.c.l.b16 %v798
        %v1133 = vunpack.c.l.b16 %v800
        %v1134 = vunpack.c.l.b16 %v824
        %v1135 = vunpack.c.l.b16 %v838
        %v1136 = vunpack.c.l.b16 %v846
        %v1137 = vunpack.c.l.b16 %v848
        %v1138 = vunpack.c.l.b16 %v831
        %v1139 = vunpack.c.l.b16 %v845
        %v1140 = vunpack.c.l.b16 %v847
        %v1141 = vunpack.c.l.b16 %v849
        %v1142 = vunpack.c.l.b16 %v873
        %v1143 = vunpack.c.l.b16 %v887
        %v1144 = vunpack.c.l.b16 %v895
        %v1145 = vunpack.c.l.b16 %v897
        %v1146 = vunpack.c.l.b16 %v880
        %v1147 = vunpack.c.l.b16 %v894
        %v1148 = vunpack.c.l.b16 %v896
        %v1149 = vunpack.c.l.b16 %v898
        %v1150 = vunpack.c.l.b16 %v922
        %v1151 = vunpack.c.l.b16 %v936
        %v1152 = vunpack.c.l.b16 %v944
        %v1153 = vunpack.c.l.b16 %v946
        %v1154 = vunpack.c.l.b16 %v929
        %v1155 = vunpack.c.l.b16 %v943
        %v1156 = vunpack.c.l.b16 %v945
        %v1157 = vunpack.c.l.b16 %v947
        %v1158 = vunpack.c.l.b16 %v971
        %v1159 = vunpack.c.l.b16 %v985
        %v1160 = vunpack.c.l.b16 %v993
        %v1161 = vunpack.c.l.b16 %v995
        %v1162 = vunpack.c.l.b16 %v978
        %v1163 = vunpack.c.l.b16 %v992
        %v1164 = vunpack.c.l.b16 %v994
        %v1165 = vunpack.c.l.b16 %v996
        %v1166 = vunpack.c.l.b16 %v1020
        %v1167 = vunpack.c.l.b16 %v1034
        %v1168 = vunpack.c.l.b16 %v1042
        %v1169 = vunpack.c.l.b16 %v1044
        %v1170 = vunpack.c.l.b16 %v1027
        %v1171 = vunpack.c.l.b16 %v1041
        %v1172 = vunpack.c.l.b16 %v1043
        %v1173 = vunpack.c.l.b16 %v1045
        %v1174 = vrot.slane %v1054, 7
        %vm1175 = vcmask 1041409
        %v1176 = vsel %vm1175, %v1174, %v1046
        %v1177 = vrot.slane %v1062, 6
        %vm1178 = vcmask 1042434
        %v1179 = vsel %vm1178, %v1177, %v1176
        %v1180 = vrot.slane %v1070, 5
        %vm1181 = vcmask 1043459
        %v1182 = vsel %vm1181, %v1180, %v1179
        %v1183 = vrot.slane %v1078, 4
        %vm1184 = vcmask 1044484
        %v1185 = vsel %vm1184, %v1183, %v1182
        %v1186 = vrot.slane %v1086, 3
        %vm1187 = vcmask 1045509
        %v1188 = vsel %vm1187, %v1186, %v1185
        %v1189 = vrot.slane %v1094, 2
        %vm1190 = vcmask 1046534
        %v1191 = vsel %vm1190, %v1189, %v1188
        %v1192 = vrot.slane %v1102, 1
        %vm1193 = vcmask 1047559
        %v1194 = vsel %vm1193, %v1192, %v1191
        %v1195 = vrot.slane %v1055, 7
        %v1196 = vsel %vm1175, %v1195, %v1047
        %v1197 = vrot.slane %v1063, 6
        %v1198 = vsel %vm1178, %v1197, %v1196
        %v1199 = vrot.slane %v1071, 5
        %v1200 = vsel %vm1181, %v1199, %v1198
        %v1201 = vrot.slane %v1079, 4
        %v1202 = vsel %vm1184, %v1201, %v1200
        %v1203 = vrot.slane %v1087, 3
        %v1204 = vsel %vm1187, %v1203, %v1202
        %v1205 = vrot.slane %v1095, 2
        %v1206 = vsel %vm1190, %v1205, %v1204
        %v1207 = vrot.slane %v1103, 1
        %v1208 = vsel %vm1193, %v1207, %v1206
        %v1209 = vrot.slane %v1056, 7
        %v1210 = vsel %vm1175, %v1209, %v1048
        %v1211 = vrot.slane %v1064, 6
        %v1212 = vsel %vm1178, %v1211, %v1210
        %v1213 = vrot.slane %v1072, 5
        %v1214 = vsel %vm1181, %v1213, %v1212
        %v1215 = vrot.slane %v1080, 4
        %v1216 = vsel %vm1184, %v1215, %v1214
        %v1217 = vrot.slane %v1088, 3
        %v1218 = vsel %vm1187, %v1217, %v1216
        %v1219 = vrot.slane %v1096, 2
        %v1220 = vsel %vm1190, %v1219, %v1218
        %v1221 = vrot.slane %v1104, 1
        %v1222 = vsel %vm1193, %v1221, %v1220
        %v1223 = vrot.slane %v1057, 7
        %v1224 = vsel %vm1175, %v1223, %v1049
        %v1225 = vrot.slane %v1065, 6
        %v1226 = vsel %vm1178, %v1225, %v1224
        %v1227 = vrot.slane %v1073, 5
        %v1228 = vsel %vm1181, %v1227, %v1226
        %v1229 = vrot.slane %v1081, 4
        %v1230 = vsel %vm1184, %v1229, %v1228
        %v1231 = vrot.slane %v1089, 3
        %v1232 = vsel %vm1187, %v1231, %v1230
        %v1233 = vrot.slane %v1097, 2
        %v1234 = vsel %vm1190, %v1233, %v1232
        %v1235 = vrot.slane %v1105, 1
        %v1236 = vsel %vm1193, %v1235, %v1234
        %v1237 = vrot.slane %v1058, 7
        %v1238 = vsel %vm1175, %v1237, %v1050
        %v1239 = vrot.slane %v1066, 6
        %v1240 = vsel %vm1178, %v1239, %v1238
        %v1241 = vrot.slane %v1074, 5
        %v1242 = vsel %vm1181, %v1241, %v1240
        %v1243 = vrot.slane %v1082, 4
        %v1244 = vsel %vm1184, %v1243, %v1242
        %v1245 = vrot.slane %v1090, 3
        %v1246 = vsel %vm1187, %v1245, %v1244
        %v1247 = vrot.slane %v1098, 2
        %v1248 = vsel %vm1190, %v1247, %v1246
        %v1249 = vrot.slane %v1106, 1
        %v1250 = vsel %vm1193, %v1249, %v1248
        %v1251 = vrot.slane %v1059, 7
        %v1252 = vsel %vm1175, %v1251, %v1051
        %v1253 = vrot.slane %v1067, 6
        %v1254 = vsel %vm1178, %v1253, %v1252
        %v1255 = vrot.slane %v1075, 5
        %v1256 = vsel %vm1181, %v1255, %v1254
        %v1257 = vrot.slane %v1083, 4
        %v1258 = vsel %vm1184, %v1257, %v1256
        %v1259 = vrot.slane %v1091, 3
        %v1260 = vsel %vm1187, %v1259, %v1258
        %v1261 = vrot.slane %v1099, 2
        %v1262 = vsel %vm1190, %v1261, %v1260
        %v1263 = vrot.slane %v1107, 1
        %v1264 = vsel %vm1193, %v1263, %v1262
        %v1265 = vrot.slane %v1060, 7
        %v1266 = vsel %vm1175, %v1265, %v1052
        %v1267 = vrot.slane %v1068, 6
        %v1268 = vsel %vm1178, %v1267, %v1266
        %v1269 = vrot.slane %v1076, 5
        %v1270 = vsel %vm1181, %v1269, %v1268
        %v1271 = vrot.slane %v1084, 4
        %v1272 = vsel %vm1184, %v1271, %v1270
        %v1273 = vrot.slane %v1092, 3
        %v1274 = vsel %vm1187, %v1273, %v1272
        %v1275 = vrot.slane %v1100, 2
        %v1276 = vsel %vm1190, %v1275, %v1274
        %v1277 = vrot.slane %v1108, 1
        %v1278 = vsel %vm1193, %v1277, %v1276
        %v1279 = vrot.slane %v1061, 7
        %v1280 = vsel %vm1175, %v1279, %v1053
        %v1281 = vrot.slane %v1069, 6
        %v1282 = vsel %vm1178, %v1281, %v1280
        %v1283 = vrot.slane %v1077, 5
        %v1284 = vsel %vm1181, %v1283, %v1282
        %v1285 = vrot.slane %v1085, 4
        %v1286 = vsel %vm1184, %v1285, %v1284
        %v1287 = vrot.slane %v1093, 3
        %v1288 = vsel %vm1187, %v1287, %v1286
        %v1289 = vrot.slane %v1101, 2
        %v1290 = vsel %vm1190, %v1289, %v1288
        %v1291 = vrot.slane %v1109, 1
        %v1292 = vsel %vm1193, %v1291, %v1290
        %v1293 = vrot.slane %v1118, 7
        %v1294 = vsel %vm1175, %v1293, %v1110
        %v1295 = vrot.slane %v1126, 6
        %v1296 = vsel %vm1178, %v1295, %v1294
        %v1297 = vrot.slane %v1134, 5
        %v1298 = vsel %vm1181, %v1297, %v1296
        %v1299 = vrot.slane %v1142, 4
        %v1300 = vsel %vm1184, %v1299, %v1298
        %v1301 = vrot.slane %v1150, 3
        %v1302 = vsel %vm1187, %v1301, %v1300
        %v1303 = vrot.slane %v1158, 2
        %v1304 = vsel %vm1190, %v1303, %v1302
        %v1305 = vrot.slane %v1166, 1
        %v1306 = vsel %vm1193, %v1305, %v1304
        %v1307 = vrot.slane %v1119, 7
        %v1308 = vsel %vm1175, %v1307, %v1111
        %v1309 = vrot.slane %v1127, 6
        %v1310 = vsel %vm1178, %v1309, %v1308
        %v1311 = vrot.slane %v1135, 5
        %v1312 = vsel %vm1181, %v1311, %v1310
        %v1313 = vrot.slane %v1143, 4
        %v1314 = vsel %vm1184, %v1313, %v1312
        %v1315 = vrot.slane %v1151, 3
        %v1316 = vsel %vm1187, %v1315, %v1314
        %v1317 = vrot.slane %v1159, 2
        %v1318 = vsel %vm1190, %v1317, %v1316
        %v1319 = vrot.slane %v1167, 1
        %v1320 = vsel %vm1193, %v1319, %v1318
        %v1321 = vrot.slane %v1120, 7
        %v1322 = vsel %vm1175, %v1321, %v1112
        %v1323 = vrot.slane %v1128, 6
        %v1324 = vsel %vm1178, %v1323, %v1322
        %v1325 = vrot.slane %v1136, 5
        %v1326 = vsel %vm1181, %v1325, %v1324
        %v1327 = vrot.slane %v1144, 4
        %v1328 = vsel %vm1184, %v1327, %v1326
        %v1329 = vrot.slane %v1152, 3
        %v1330 = vsel %vm1187, %v1329, %v1328
        %v1331 = vrot.slane %v1160, 2
        %v1332 = vsel %vm1190, %v1331, %v1330
        %v1333 = vrot.slane %v1168, 1
        %v1334 = vsel %vm1193, %v1333, %v1332
        %v1335 = vrot.slane %v1121, 7
        %v1336 = vsel %vm1175, %v1335, %v1113
        %v1337 = vrot.slane %v1129, 6
        %v1338 = vsel %vm1178, %v1337, %v1336
        %v1339 = vrot.slane %v1137, 5
        %v1340 = vsel %vm1181, %v1339, %v1338
        %v1341 = vrot.slane %v1145, 4
        %v1342 = vsel %vm1184, %v1341, %v1340
        %v1343 = vrot.slane %v1153, 3
        %v1344 = vsel %vm1187, %v1343, %v1342
        %v1345 = vrot.slane %v1161, 2
        %v1346 = vsel %vm1190, %v1345, %v1344
        %v1347 = vrot.slane %v1169, 1
        %v1348 = vsel %vm1193, %v1347, %v1346
        %v1349 = vrot.slane %v1122, 7
        %v1350 = vsel %vm1175, %v1349, %v1114
        %v1351 = vrot.slane %v1130, 6
        %v1352 = vsel %vm1178, %v1351, %v1350
        %v1353 = vrot.slane %v1138, 5
        %v1354 = vsel %vm1181, %v1353, %v1352
        %v1355 = vrot.slane %v1146, 4
        %v1356 = vsel %vm1184, %v1355, %v1354
        %v1357 = vrot.slane %v1154, 3
        %v1358 = vsel %vm1187, %v1357, %v1356
        %v1359 = vrot.slane %v1162, 2
        %v1360 = vsel %vm1190, %v1359, %v1358
        %v1361 = vrot.slane %v1170, 1
        %v1362 = vsel %vm1193, %v1361, %v1360
        %v1363 = vrot.slane %v1123, 7
        %v1364 = vsel %vm1175, %v1363, %v1115
        %v1365 = vrot.slane %v1131, 6
        %v1366 = vsel %vm1178, %v1365, %v1364
        %v1367 = vrot.slane %v1139, 5
        %v1368 = vsel %vm1181, %v1367, %v1366
        %v1369 = vrot.slane %v1147, 4
        %v1370 = vsel %vm1184, %v1369, %v1368
        %v1371 = vrot.slane %v1155, 3
        %v1372 = vsel %vm1187, %v1371, %v1370
        %v1373 = vrot.slane %v1163, 2
        %v1374 = vsel %vm1190, %v1373, %v1372
        %v1375 = vrot.slane %v1171, 1
        %v1376 = vsel %vm1193, %v1375, %v1374
        %v1377 = vrot.slane %v1124, 7
        %v1378 = vsel %vm1175, %v1377, %v1116
        %v1379 = vrot.slane %v1132, 6
        %v1380 = vsel %vm1178, %v1379, %v1378
        %v1381 = vrot.slane %v1140, 5
        %v1382 = vsel %vm1181, %v1381, %v1380
        %v1383 = vrot.slane %v1148, 4
        %v1384 = vsel %vm1184, %v1383, %v1382
        %v1385 = vrot.slane %v1156, 3
        %v1386 = vsel %vm1187, %v1385, %v1384
        %v1387 = vrot.slane %v1164, 2
        %v1388 = vsel %vm1190, %v1387, %v1386
        %v1389 = vrot.slane %v1172, 1
        %v1390 = vsel %vm1193, %v1389, %v1388
        %v1391 = vrot.slane %v1125, 7
        %v1392 = vsel %vm1175, %v1391, %v1117
        %v1393 = vrot.slane %v1133, 6
        %v1394 = vsel %vm1178, %v1393, %v1392
        %v1395 = vrot.slane %v1141, 5
        %v1396 = vsel %vm1181, %v1395, %v1394
        %v1397 = vrot.slane %v1149, 4
        %v1398 = vsel %vm1184, %v1397, %v1396
        %v1399 = vrot.slane %v1157, 3
        %v1400 = vsel %vm1187, %v1399, %v1398
        %v1401 = vrot.slane %v1165, 2
        %v1402 = vsel %vm1190, %v1401, %v1400
        %v1403 = vrot.slane %v1173, 1
        %v1404 = vsel %vm1193, %v1403, %v1402
        %v1405 = vpack.c.b16 %v1306, %v1194
        %v1406 = vpack.c.b16 %v1320, %v1208
        %v1407 = vpack.c.b16 %v1334, %v1222
        %v1408 = vpack.c.b16 %v1348, %v1236
        %v1409 = vpack.c.b16 %v1362, %v1250
        %v1410 = vpack.c.b16 %v1376, %v1264
        %v1411 = vpack.c.b16 %v1390, %v1278
        %v1412 = vpack.c.b16 %v1404, %v1292
        %vm1421 = vcmask 130048
        %v1423 = vsel %vm1421, %v245, 0
        %1425 = vmatprep.subr.bf16.mxu0 0
        %1426 = vmatpush1.bf16.msra.mxu0 0
        %1427 = vmatprep.subr.bf16.mxu0 0
        %1428 = vmatpush1.bf16.msra.mxu0 0
        %1429 = vmatprep.subr.bf16.mxu0 0
        %1430 = vmatpush1.bf16.msra.mxu0 0
        %1431 = vmatprep.subr.bf16.mxu0 0
        %1432 = vmatpush1.bf16.msra.mxu0 0
        %1433 = vmatprep.subr.bf16.mxu0 0
        %1434 = vmatpush1.bf16.msra.mxu0 0
        %1435 = vmatprep.subr.bf16.mxu0 0
        %1436 = vmatpush1.bf16.msra.mxu0 0
        %1437 = vmatprep.subr.bf16.mxu0 0
        %1438 = vmatpush1.bf16.msra.mxu0 0
        %1439 = vmatprep.subr.bf16.mxu0 %v1406
        %1440 = vmatpush1.bf16.msra.mxu0 %v1405
        %1441 = vmatprep.subr.bf16.mxu0 0
        %1442 = vmatpush2.bf16.msra.mxu0 0
        %1443 = vmatprep.subr.bf16.mxu0 0
        %1444 = vmatpush2.bf16.msra.mxu0 0
        %1445 = vmatprep.subr.bf16.mxu0 0
        %1446 = vmatpush2.bf16.msra.mxu0 0
        %1447 = vmatprep.subr.bf16.mxu0 0
        %1448 = vmatpush2.bf16.msra.mxu0 0
        %1449 = vmatprep.subr.bf16.mxu0 0
        %1450 = vmatpush2.bf16.msra.mxu0 0
        %1451 = vmatprep.subr.bf16.mxu0 0
        %1452 = vmatpush2.bf16.msra.mxu0 0
        %1453 = vmatprep.subr.bf16.mxu0 0
        %1454 = vmatpush2.bf16.msra.mxu0 0
        %1455 = vmatprep.subr.bf16.mxu0 0
        %1456 = vmatpush2.bf16.msra.mxu0 0
        %1457 = vmatprep.mubr.bf16.mxu0 0
        %1458 = vmatmul.mubr.bf16.gmra.mxu0 %v1423
        %v1459 = vpop.f32.mrf.mxu0
        %v1460 = vadd.f32 0.0, %v1459
        %v1461 = vpop.f32.mrf.mxu0
        %v1462 = vadd.f32 0.0, %v1461
        %v1463 = vpop.f32.mrf.mxu0
        %v1464 = vadd.f32 0.0, %v1463
        %v1465 = vpop.f32.mrf.mxu0
        %v1466 = vadd.f32 0.0, %v1465
        %1467 = vdwg.mxu0
        %1468 = vmatprep.subr.bf16.mxu0 0
        %1469 = vmatpush1.bf16.msra.mxu0 0
        %1470 = vmatprep.subr.bf16.mxu0 0
        %1471 = vmatpush1.bf16.msra.mxu0 0
        %1472 = vmatprep.subr.bf16.mxu0 0
        %1473 = vmatpush1.bf16.msra.mxu0 0
        %1474 = vmatprep.subr.bf16.mxu0 0
        %1475 = vmatpush1.bf16.msra.mxu0 0
        %1476 = vmatprep.subr.bf16.mxu0 0
        %1477 = vmatpush1.bf16.msra.mxu0 0
        %1478 = vmatprep.subr.bf16.mxu0 0
        %1479 = vmatpush1.bf16.msra.mxu0 0
        %1480 = vmatprep.subr.bf16.mxu0 0
        %1481 = vmatpush1.bf16.msra.mxu0 0
        %1482 = vmatprep.subr.bf16.mxu0 %v1408
        %1483 = vmatpush1.bf16.msra.mxu0 %v1407
        %1484 = vmatprep.subr.bf16.mxu0 0
        %1485 = vmatpush2.bf16.msra.mxu0 0
        %1486 = vmatprep.subr.bf16.mxu0 0
        %1487 = vmatpush2.bf16.msra.mxu0 0
        %1488 = vmatprep.subr.bf16.mxu0 0
        %1489 = vmatpush2.bf16.msra.mxu0 0
        %1490 = vmatprep.subr.bf16.mxu0 0
        %1491 = vmatpush2.bf16.msra.mxu0 0
        %1492 = vmatprep.subr.bf16.mxu0 0
        %1493 = vmatpush2.bf16.msra.mxu0 0
        %1494 = vmatprep.subr.bf16.mxu0 0
        %1495 = vmatpush2.bf16.msra.mxu0 0
        %1496 = vmatprep.subr.bf16.mxu0 0
        %1497 = vmatpush2.bf16.msra.mxu0 0
        %1498 = vmatprep.subr.bf16.mxu0 0
        %1499 = vmatpush2.bf16.msra.mxu0 0
        %1500 = vmatprep.mubr.bf16.mxu0 0
        %1501 = vmatmul.mubr.bf16.gmra.mxu0 %v1423
        %v1502 = vpop.f32.mrf.mxu0
        %v1503 = vadd.f32 0.0, %v1502
        %v1504 = vpop.f32.mrf.mxu0
        %v1505 = vadd.f32 0.0, %v1504
        %v1506 = vpop.f32.mrf.mxu0
        %v1507 = vadd.f32 0.0, %v1506
        %v1508 = vpop.f32.mrf.mxu0
        %v1509 = vadd.f32 0.0, %v1508
        %1510 = vdwg.mxu0
        %1511 = vmatprep.subr.bf16.mxu0 0
        %1512 = vmatpush1.bf16.msra.mxu0 0
        %1513 = vmatprep.subr.bf16.mxu0 0
        %1514 = vmatpush1.bf16.msra.mxu0 0
        %1515 = vmatprep.subr.bf16.mxu0 0
        %1516 = vmatpush1.bf16.msra.mxu0 0
        %1517 = vmatprep.subr.bf16.mxu0 0
        %1518 = vmatpush1.bf16.msra.mxu0 0
        %1519 = vmatprep.subr.bf16.mxu0 0
        %1520 = vmatpush1.bf16.msra.mxu0 0
        %1521 = vmatprep.subr.bf16.mxu0 0
        %1522 = vmatpush1.bf16.msra.mxu0 0
        %1523 = vmatprep.subr.bf16.mxu0 0
        %1524 = vmatpush1.bf16.msra.mxu0 0
        %1525 = vmatprep.subr.bf16.mxu0 %v1410
        %1526 = vmatpush1.bf16.msra.mxu0 %v1409
        %1527 = vmatprep.subr.bf16.mxu0 0
        %1528 = vmatpush2.bf16.msra.mxu0 0
        %1529 = vmatprep.subr.bf16.mxu0 0
        %1530 = vmatpush2.bf16.msra.mxu0 0
        %1531 = vmatprep.subr.bf16.mxu0 0
        %1532 = vmatpush2.bf16.msra.mxu0 0
        %1533 = vmatprep.subr.bf16.mxu0 0
        %1534 = vmatpush2.bf16.msra.mxu0 0
        %1535 = vmatprep.subr.bf16.mxu0 0
        %1536 = vmatpush2.bf16.msra.mxu0 0
        %1537 = vmatprep.subr.bf16.mxu0 0
        %1538 = vmatpush2.bf16.msra.mxu0 0
        %1539 = vmatprep.subr.bf16.mxu0 0
        %1540 = vmatpush2.bf16.msra.mxu0 0
        %1541 = vmatprep.subr.bf16.mxu0 0
        %1542 = vmatpush2.bf16.msra.mxu0 0
        %1543 = vmatprep.mubr.bf16.mxu0 0
        %1544 = vmatmul.mubr.bf16.gmra.mxu0 %v1423
        %v1545 = vpop.f32.mrf.mxu0
        %v1546 = vadd.f32 0.0, %v1545
        %v1547 = vpop.f32.mrf.mxu0
        %v1548 = vadd.f32 0.0, %v1547
        %v1549 = vpop.f32.mrf.mxu0
        %v1550 = vadd.f32 0.0, %v1549
        %v1551 = vpop.f32.mrf.mxu0
        %v1552 = vadd.f32 0.0, %v1551
        %1553 = vdwg.mxu0
        %1554 = vmatprep.subr.bf16.mxu0 0
        %1555 = vmatpush1.bf16.msra.mxu0 0
        %1556 = vmatprep.subr.bf16.mxu0 0
        %1557 = vmatpush1.bf16.msra.mxu0 0
        %1558 = vmatprep.subr.bf16.mxu0 0
        %1559 = vmatpush1.bf16.msra.mxu0 0
        %1560 = vmatprep.subr.bf16.mxu0 0
        %1561 = vmatpush1.bf16.msra.mxu0 0
        %1562 = vmatprep.subr.bf16.mxu0 0
        %1563 = vmatpush1.bf16.msra.mxu0 0
        %1564 = vmatprep.subr.bf16.mxu0 0
        %1565 = vmatpush1.bf16.msra.mxu0 0
        %1566 = vmatprep.subr.bf16.mxu0 0
        %1567 = vmatpush1.bf16.msra.mxu0 0
        %1568 = vmatprep.subr.bf16.mxu0 %v1412
        %1569 = vmatpush1.bf16.msra.mxu0 %v1411
        %1570 = vmatprep.subr.bf16.mxu0 0
        %1571 = vmatpush2.bf16.msra.mxu0 0
        %1572 = vmatprep.subr.bf16.mxu0 0
        %1573 = vmatpush2.bf16.msra.mxu0 0
        %1574 = vmatprep.subr.bf16.mxu0 0
        %1575 = vmatpush2.bf16.msra.mxu0 0
        %1576 = vmatprep.subr.bf16.mxu0 0
        %1577 = vmatpush2.bf16.msra.mxu0 0
        %1578 = vmatprep.subr.bf16.mxu0 0
        %1579 = vmatpush2.bf16.msra.mxu0 0
        %1580 = vmatprep.subr.bf16.mxu0 0
        %1581 = vmatpush2.bf16.msra.mxu0 0
        %1582 = vmatprep.subr.bf16.mxu0 0
        %1583 = vmatpush2.bf16.msra.mxu0 0
        %1584 = vmatprep.subr.bf16.mxu0 0
        %1585 = vmatpush2.bf16.msra.mxu0 0
        %1586 = vmatprep.mubr.bf16.mxu0 0
        %1587 = vmatmul.mubr.bf16.gmra.mxu0 %v1423
        %v1588 = vpop.f32.mrf.mxu0
        %v1589 = vadd.f32 0.0, %v1588
        %v1590 = vpop.f32.mrf.mxu0
        %v1591 = vadd.f32 0.0, %v1590
        %v1592 = vpop.f32.mrf.mxu0
        %v1593 = vadd.f32 0.0, %v1592
        %v1594 = vpop.f32.mrf.mxu0
        %v1595 = vadd.f32 0.0, %v1594
        %1596 = vdwg.mxu0
        %v1597 = vmax.f32 %v1460, 0.0
        %v1598 = vmax.f32 %v1462, 0.0
        %v1599 = vmax.f32 %v1503, 0.0
        %v1600 = vmax.f32 %v1505, 0.0
        %v1601 = vmax.f32 %v1546, 0.0
        %v1602 = vmax.f32 %v1548, 0.0
        %v1603 = vmax.f32 %v1589, 0.0
        %v1604 = vmax.f32 %v1591, 0.0
        %v1605 = vmax.f32 %v1464, 0.0
        %v1606 = vmax.f32 %v1466, 0.0
        %v1607 = vmax.f32 %v1507, 0.0
        %v1608 = vmax.f32 %v1509, 0.0
        %v1609 = vmax.f32 %v1550, 0.0
        %v1610 = vmax.f32 %v1552, 0.0
        %v1611 = vmax.f32 %v1593, 0.0
        %v1612 = vmax.f32 %v1595, 0.0
        %v1613 = vpack.c.bf16 %v1605, %v1597
        %v1614 = vpack.c.bf16 %v1606, %v1598
        %v1615 = vpack.c.bf16 %v1607, %v1599
        %v1616 = vpack.c.bf16 %v1608, %v1600
        %v1617 = vpack.c.bf16 %v1609, %v1601
        %v1618 = vpack.c.bf16 %v1610, %v1602
        %v1619 = vpack.c.bf16 %v1611, %v1603
        %v1620 = vpack.c.bf16 %v1612, %v1604
        %v1625 = vunpack.c.l.b16 %v197
        %v1626 = vunpack.c.l.b16 %v198
        %v1627 = vunpack.c.l.b16 %v199
        %v1628 = vunpack.c.l.b16 %v200
        %v1629 = vpack.c.b16 %v1626, %v1625
        %v1630 = vpack.c.b16 %v1628, %v1627
        %v1632 = vsel %vm1421, %v1629, 0
        %v1635 = vsel %vm1421, %v1630, 0
        %1637 = vmatprep.subr.bf16.mxu0 0
        %1638 = vmatpush1.bf16.msra.mxu0 0
        %1639 = vmatprep.subr.bf16.mxu0 0
        %1640 = vmatpush1.bf16.msra.mxu0 0
        %1641 = vmatprep.subr.bf16.mxu0 0
        %1642 = vmatpush1.bf16.msra.mxu0 0
        %1643 = vmatprep.subr.bf16.mxu0 0
        %1644 = vmatpush1.bf16.msra.mxu0 0
        %1645 = vmatprep.subr.bf16.mxu0 0
        %1646 = vmatpush1.bf16.msra.mxu0 0
        %1647 = vmatprep.subr.bf16.mxu0 0
        %1648 = vmatpush1.bf16.msra.mxu0 0
        %1649 = vmatprep.subr.bf16.mxu0 0
        %1650 = vmatpush1.bf16.msra.mxu0 0
        %1651 = vmatprep.subr.bf16.mxu0 %v1614
        %1652 = vmatpush1.bf16.msra.mxu0 %v1613
        %1653 = vmatprep.subr.bf16.mxu0 0
        %1654 = vmatpush2.bf16.msra.mxu0 0
        %1655 = vmatprep.subr.bf16.mxu0 0
        %1656 = vmatpush2.bf16.msra.mxu0 0
        %1657 = vmatprep.subr.bf16.mxu0 0
        %1658 = vmatpush2.bf16.msra.mxu0 0
        %1659 = vmatprep.subr.bf16.mxu0 0
        %1660 = vmatpush2.bf16.msra.mxu0 0
        %1661 = vmatprep.subr.bf16.mxu0 0
        %1662 = vmatpush2.bf16.msra.mxu0 0
        %1663 = vmatprep.subr.bf16.mxu0 0
        %1664 = vmatpush2.bf16.msra.mxu0 0
        %1665 = vmatprep.subr.bf16.mxu0 0
        %1666 = vmatpush2.bf16.msra.mxu0 0
        %1667 = vmatprep.subr.bf16.mxu0 0
        %1668 = vmatpush2.bf16.msra.mxu0 0
        %1669 = vmatprep.mubr.bf16.mxu0 0
        %1670 = vmatmul.mubr.bf16.gmra.mxu0 %v1632
        %v1671 = vpop.f32.mrf.mxu0
        %v1672 = vadd.f32 %v208, %v1671
        %v1673 = vpop.f32.mrf.mxu0
        %v1674 = vadd.f32 %v208, %v1673
        %v1675 = vpop.f32.mrf.mxu0
        %v1676 = vadd.f32 %v213, %v1675
        %v1677 = vpop.f32.mrf.mxu0
        %v1678 = vadd.f32 %v213, %v1677
        %1679 = vmatprep.mubr.bf16.mxu0 0
        %1680 = vmatmul.mubr.bf16.gmra.mxu0 %v1635
        %v1681 = vpop.f32.mrf.mxu0
        %v1682 = vadd.f32 %v218, %v1681
        %v1683 = vpop.f32.mrf.mxu0
        %v1684 = vadd.f32 %v218, %v1683
        %v1685 = vpop.f32.mrf.mxu0
        %v1686 = vadd.f32 %v223, %v1685
        %v1687 = vpop.f32.mrf.mxu0
        %v1688 = vadd.f32 %v223, %v1687
        %1689 = vdwg.mxu0
        %1690 = vmatprep.subr.bf16.mxu0 0
        %1691 = vmatpush1.bf16.msra.mxu0 0
        %1692 = vmatprep.subr.bf16.mxu0 0
        %1693 = vmatpush1.bf16.msra.mxu0 0
        %1694 = vmatprep.subr.bf16.mxu0 0
        %1695 = vmatpush1.bf16.msra.mxu0 0
        %1696 = vmatprep.subr.bf16.mxu0 0
        %1697 = vmatpush1.bf16.msra.mxu0 0
        %1698 = vmatprep.subr.bf16.mxu0 0
        %1699 = vmatpush1.bf16.msra.mxu0 0
        %1700 = vmatprep.subr.bf16.mxu0 0
        %1701 = vmatpush1.bf16.msra.mxu0 0
        %1702 = vmatprep.subr.bf16.mxu0 0
        %1703 = vmatpush1.bf16.msra.mxu0 0
        %1704 = vmatprep.subr.bf16.mxu0 %v1616
        %1705 = vmatpush1.bf16.msra.mxu0 %v1615
        %1706 = vmatprep.subr.bf16.mxu0 0
        %1707 = vmatpush2.bf16.msra.mxu0 0
        %1708 = vmatprep.subr.bf16.mxu0 0
        %1709 = vmatpush2.bf16.msra.mxu0 0
        %1710 = vmatprep.subr.bf16.mxu0 0
        %1711 = vmatpush2.bf16.msra.mxu0 0
        %1712 = vmatprep.subr.bf16.mxu0 0
        %1713 = vmatpush2.bf16.msra.mxu0 0
        %1714 = vmatprep.subr.bf16.mxu0 0
        %1715 = vmatpush2.bf16.msra.mxu0 0
        %1716 = vmatprep.subr.bf16.mxu0 0
        %1717 = vmatpush2.bf16.msra.mxu0 0
        %1718 = vmatprep.subr.bf16.mxu0 0
        %1719 = vmatpush2.bf16.msra.mxu0 0
        %1720 = vmatprep.subr.bf16.mxu0 0
        %1721 = vmatpush2.bf16.msra.mxu0 0
        %1722 = vmatprep.mubr.bf16.mxu0 0
        %1723 = vmatmul.mubr.bf16.gmra.mxu0 %v1632
        %v1724 = vpop.f32.mrf.mxu0
        %v1725 = vadd.f32 %v208, %v1724
        %v1726 = vpop.f32.mrf.mxu0
        %v1727 = vadd.f32 %v208, %v1726
        %v1728 = vpop.f32.mrf.mxu0
        %v1729 = vadd.f32 %v213, %v1728
        %v1730 = vpop.f32.mrf.mxu0
        %v1731 = vadd.f32 %v213, %v1730
        %1732 = vmatprep.mubr.bf16.mxu0 0
        %1733 = vmatmul.mubr.bf16.gmra.mxu0 %v1635
        %v1734 = vpop.f32.mrf.mxu0
        %v1735 = vadd.f32 %v218, %v1734
        %v1736 = vpop.f32.mrf.mxu0
        %v1737 = vadd.f32 %v218, %v1736
        %v1738 = vpop.f32.mrf.mxu0
        %v1739 = vadd.f32 %v223, %v1738
        %v1740 = vpop.f32.mrf.mxu0
        %v1741 = vadd.f32 %v223, %v1740
        %1742 = vdwg.mxu0
        %1743 = vmatprep.subr.bf16.mxu0 0
        %1744 = vmatpush1.bf16.msra.mxu0 0
        %1745 = vmatprep.subr.bf16.mxu0 0
        %1746 = vmatpush1.bf16.msra.mxu0 0
        %1747 = vmatprep.subr.bf16.mxu0 0
        %1748 = vmatpush1.bf16.msra.mxu0 0
        %1749 = vmatprep.subr.bf16.mxu0 0
        %1750 = vmatpush1.bf16.msra.mxu0 0
        %1751 = vmatprep.subr.bf16.mxu0 0
        %1752 = vmatpush1.bf16.msra.mxu0 0
        %1753 = vmatprep.subr.bf16.mxu0 0
        %1754 = vmatpush1.bf16.msra.mxu0 0
        %1755 = vmatprep.subr.bf16.mxu0 0
        %1756 = vmatpush1.bf16.msra.mxu0 0
        %1757 = vmatprep.subr.bf16.mxu0 %v1618
        %1758 = vmatpush1.bf16.msra.mxu0 %v1617
        %1759 = vmatprep.subr.bf16.mxu0 0
        %1760 = vmatpush2.bf16.msra.mxu0 0
        %1761 = vmatprep.subr.bf16.mxu0 0
        %1762 = vmatpush2.bf16.msra.mxu0 0
        %1763 = vmatprep.subr.bf16.mxu0 0
        %1764 = vmatpush2.bf16.msra.mxu0 0
        %1765 = vmatprep.subr.bf16.mxu0 0
        %1766 = vmatpush2.bf16.msra.mxu0 0
        %1767 = vmatprep.subr.bf16.mxu0 0
        %1768 = vmatpush2.bf16.msra.mxu0 0
        %1769 = vmatprep.subr.bf16.mxu0 0
        %1770 = vmatpush2.bf16.msra.mxu0 0
        %1771 = vmatprep.subr.bf16.mxu0 0
        %1772 = vmatpush2.bf16.msra.mxu0 0
        %1773 = vmatprep.subr.bf16.mxu0 0
        %1774 = vmatpush2.bf16.msra.mxu0 0
        %1775 = vmatprep.mubr.bf16.mxu0 0
        %1776 = vmatmul.mubr.bf16.gmra.mxu0 %v1632
        %v1777 = vpop.f32.mrf.mxu0
        %v1778 = vadd.f32 %v208, %v1777
        %v1779 = vpop.f32.mrf.mxu0
        %v1780 = vadd.f32 %v208, %v1779
        %v1781 = vpop.f32.mrf.mxu0
        %v1782 = vadd.f32 %v213, %v1781
        %v1783 = vpop.f32.mrf.mxu0
        %v1784 = vadd.f32 %v213, %v1783
        %1785 = vmatprep.mubr.bf16.mxu0 0
        %1786 = vmatmul.mubr.bf16.gmra.mxu0 %v1635
        %v1787 = vpop.f32.mrf.mxu0
        %v1788 = vadd.f32 %v218, %v1787
        %v1789 = vpop.f32.mrf.mxu0
        %v1790 = vadd.f32 %v218, %v1789
        %v1791 = vpop.f32.mrf.mxu0
        %v1792 = vadd.f32 %v223, %v1791
        %v1793 = vpop.f32.mrf.mxu0
        %v1794 = vadd.f32 %v223, %v1793
        %1795 = vdwg.mxu0
        %1796 = vmatprep.subr.bf16.mxu0 0
        %1797 = vmatpush1.bf16.msra.mxu0 0
        %1798 = vmatprep.subr.bf16.mxu0 0
        %1799 = vmatpush1.bf16.msra.mxu0 0
        %1800 = vmatprep.subr.bf16.mxu0 0
        %1801 = vmatpush1.bf16.msra.mxu0 0
        %1802 = vmatprep.subr.bf16.mxu0 0
        %1803 = vmatpush1.bf16.msra.mxu0 0
        %1804 = vmatprep.subr.bf16.mxu0 0
        %1805 = vmatpush1.bf16.msra.mxu0 0
        %1806 = vmatprep.subr.bf16.mxu0 0
        %1807 = vmatpush1.bf16.msra.mxu0 0
        %1808 = vmatprep.subr.bf16.mxu0 0
        %1809 = vmatpush1.bf16.msra.mxu0 0
        %1810 = vmatprep.subr.bf16.mxu0 %v1620
        %1811 = vmatpush1.bf16.msra.mxu0 %v1619
        %1812 = vmatprep.subr.bf16.mxu0 0
        %1813 = vmatpush2.bf16.msra.mxu0 0
        %1814 = vmatprep.subr.bf16.mxu0 0
        %1815 = vmatpush2.bf16.msra.mxu0 0
        %1816 = vmatprep.subr.bf16.mxu0 0
        %1817 = vmatpush2.bf16.msra.mxu0 0
        %1818 = vmatprep.subr.bf16.mxu0 0
        %1819 = vmatpush2.bf16.msra.mxu0 0
        %1820 = vmatprep.subr.bf16.mxu0 0
        %1821 = vmatpush2.bf16.msra.mxu0 0
        %1822 = vmatprep.subr.bf16.mxu0 0
        %1823 = vmatpush2.bf16.msra.mxu0 0
        %1824 = vmatprep.subr.bf16.mxu0 0
        %1825 = vmatpush2.bf16.msra.mxu0 0
        %1826 = vmatprep.subr.bf16.mxu0 0
        %1827 = vmatpush2.bf16.msra.mxu0 0
        %1828 = vmatprep.mubr.bf16.mxu0 0
        %1829 = vmatmul.mubr.bf16.gmra.mxu0 %v1632
        %v1830 = vpop.f32.mrf.mxu0
        %v1831 = vadd.f32 %v208, %v1830
        %v1832 = vpop.f32.mrf.mxu0
        %v1833 = vadd.f32 %v208, %v1832
        %v1834 = vpop.f32.mrf.mxu0
        %v1835 = vadd.f32 %v213, %v1834
        %v1836 = vpop.f32.mrf.mxu0
        %v1837 = vadd.f32 %v213, %v1836
        %1838 = vmatprep.mubr.bf16.mxu0 0
        %1839 = vmatmul.mubr.bf16.gmra.mxu0 %v1635
        %v1840 = vpop.f32.mrf.mxu0
        %v1841 = vadd.f32 %v218, %v1840
        %v1842 = vpop.f32.mrf.mxu0
        %v1843 = vadd.f32 %v218, %v1842
        %v1844 = vpop.f32.mrf.mxu0
        %v1845 = vadd.f32 %v223, %v1844
        %v1846 = vpop.f32.mrf.mxu0
        %v1847 = vadd.f32 %v223, %v1846
        %1848 = vdwg.mxu0
        %v1849 = vmax.f32 %v1672, 0.0
        %v1850 = vmax.f32 %v1676, 0.0
        %v1851 = vmax.f32 %v1682, 0.0
        %v1852 = vmax.f32 %v1686, 0.0
        %v1853 = vmax.f32 %v1849, %v1674
        %v1854 = vmax.f32 %v1850, %v1678
        %v1855 = vmax.f32 %v1851, %v1684
        %v1856 = vmax.f32 %v1852, %v1688
        %v1857 = vmax.f32 %v1853, %v1725
        %v1858 = vmax.f32 %v1854, %v1729
        %v1859 = vmax.f32 %v1855, %v1735
        %v1860 = vmax.f32 %v1856, %v1739
        %v1861 = vmax.f32 %v1857, %v1727
        %v1862 = vmax.f32 %v1858, %v1731
        %v1863 = vmax.f32 %v1859, %v1737
        %v1864 = vmax.f32 %v1860, %v1741
        %v1865 = vmax.f32 %v1861, %v1778
        %v1866 = vmax.f32 %v1862, %v1782
        %v1867 = vmax.f32 %v1863, %v1788
        %v1868 = vmax.f32 %v1864, %v1792
        %v1869 = vmax.f32 %v1865, %v1780
        %v1870 = vmax.f32 %v1866, %v1784
        %v1871 = vmax.f32 %v1867, %v1790
        %v1872 = vmax.f32 %v1868, %v1794
        %v1873 = vmax.f32 %v1869, %v1831
        %v1874 = vmax.f32 %v1870, %v1835
        %v1875 = vmax.f32 %v1871, %v1841
        %v1876 = vmax.f32 %v1872, %v1845
        %v1877 = vmax.f32 %v1873, %v1833
        %v1878 = vmax.f32 %v1874, %v1837
        %v1879 = vmax.f32 %v1875, %v1843
        %v1880 = vmax.f32 %v1876, %v1847
        %1881 = vst [vmem:[%s185] sm:$0xff] %v1877
        %1882 = vst [vmem:[%s185 + $0x8] sm:$0xff] %v1878
        %1883 = vst [vmem:[%s185 + $0x10] sm:$0xff] %v1879
        %1884 = vst [vmem:[%s185 + $0x18] sm:$0xff] %v1880
        %s1885 = sand.u32 %s109, 1
        %s1886 = scalar_lea.sflag [#allocation3], %s1885
        %s1887 = sand.u32 %s109, 1
        %s1888 = smul.addr %s1887, 32
        %s1889 = scalar_lea.vmem [#allocation2], %s1888
        // Predicated region
        $region33: #{tpu_custom_call.1} parent=31 // pred_check
          %p1890 = pneg %p119
        $region34: #{tpu_custom_call.1} parent=31 // pred_check_branch
          %1892 = sbr.rel (%p1890) target = $region36
        $region35: #{tpu_custom_call.1} parent=31 // pred_region
          %s1894 = ssub.s32 512, 512
          %1895 = vsyncadd %s1886, %s1894
          %s1896 = smul.addr %s21, 4
          %s1897 = sadd.s32 %s22, %s1896
          %s1898 = smul.addr %s1897, 128
          %s1899 = scalar_lea.hbm %s3, %s1898
          %s1900 = sshll.u32 %s1889, 4
          %s1901 = int_to_ptr.vmem [resolvable:$true] %s1900
          %1906 = dma.vmem_to_hbm [thread:$0]  %s1901, 512, %s1899, %s1886, 128, 128, 8
        $region36: #{tpu_custom_call.1} parent=31 // pred_fallthru
          _
      $region32: #{tpu_custom_call.1} parent=5 // pred_fallthru
        _
      %p1907 = scmp.le.s32.totalorder 2, %s12
      // Predicated region
      $region37: #{tpu_custom_call.1} parent=5 // pred_check
        %p1908 = pneg %p1907
      $region38: #{tpu_custom_call.1} parent=5 // pred_check_branch
        %1910 = sbr.rel (%p1908) target = $region40
      $region39: #{tpu_custom_call.1} parent=5 // pred_region
        %s1911 = ssub.s32 %s12, 2
        // Predicated region
        $region41: #{tpu_custom_call.1} parent=39 // pred_check
          %p1912 = pneg %p125
        $region42: #{tpu_custom_call.1} parent=39 // pred_check_branch
          %1914 = sbr.rel (%p1912) target = $region44
        $region43: #{tpu_custom_call.1} parent=39 // pred_region
          %s1915 = sand.u32 %s110, 1
          %s1916 = scalar_lea.sflag [#allocation3], %s1915
          %s1917 = sand.u32 %s110, 1
          %s1918 = smul.addr %s1917, 32
          %s1919 = scalar_lea.vmem [#allocation2], %s1918
          %1920 = dma.done %s1916, 512
        $region44: #{tpu_custom_call.1} parent=39 // pred_fallthru
          _
      $region40: #{tpu_custom_call.1} parent=5 // pred_fallthru
        _
    $region6: #{tpu_custom_call.1} parent=1 // loop_footer
      %s16 = sadd.s32 1, %s12
    $region7: #{tpu_custom_call.1} parent=1 // loop_footer_branch
      %11 = sbr.rel target = $region3
    $region8: #{tpu_custom_call.1} parent=1 // loop_exit
      _
    %1921 = vsyncpa [#allocation3], 1
    %s1922 = scalar_lea.sflag [#allocation3], 1
    %1923 = vsyncpa %s1922, 1

</llo_original>
